<compile_context>
chip_gen: v6e
topology: v6e:2x2x1
jax: 0.10.0
libtpu: 0.0.40
codegen_flags: <defaults>
</compile_context>

<pallas_src>
import jax
import jax.numpy as jnp
from jax import lax
from jax.experimental import pallas as pl
from jax.experimental.pallas import tpu as pltpu


def _bottleneck_kernel(x_top_ref, x_mid_ref, x_bot_ref,
                       w1_ref, s1_ref, b1_ref,
                       w2_ref, s2_ref, b2_ref,
                       w3_ref, s3_ref, b3_ref,
                       o_ref):
    # x_mid_ref: (1, tH, W, Cin); x_top_ref / x_bot_ref: (1, d, W, Cin) halos.
    tH, W, Cin = x_mid_ref.shape[1], x_mid_ref.shape[2], x_mid_ref.shape[3]
    d = x_top_ref.shape[1]
    P = w1_ref.shape[1]
    Cout = w3_ref.shape[1]
    rows3 = tH + 2 * d

    h = pl.program_id(1)
    nh = pl.num_programs(1)

    # ---- assemble the H-halo'd input slab (tH + 2d rows) ----
    xc = x_mid_ref[0]                                          # (tH, W, Cin) f32
    xin = jnp.concatenate([x_top_ref[0], xc, x_bot_ref[0]], axis=0)

    # ---- conv1 (1x1) + bn1 + relu : single MXU matmul, bf16 operands ----
    a1 = xin.reshape(rows3 * W, Cin).astype(jnp.bfloat16)
    t1 = jnp.dot(a1, w1_ref[...], preferred_element_type=jnp.float32)
    t1 = jnp.maximum(t1 * s1_ref[...] + b1_ref[...], 0.0)
    t1 = t1.reshape(rows3, W, P)

    # conv2's zero padding applies to the post-bn1/relu activations, which are
    # NOT zero for zero input (bias term) -> zero the halo rows that fall
    # outside the image (first tile's top halo, last tile's bottom halo).
    top_keep = jnp.where(h > 0, 1.0, 0.0)
    bot_keep = jnp.where(h < nh - 1, 1.0, 0.0)
    t1 = jnp.concatenate(
        [t1[:d] * top_keep, t1[d:rows3 - d], t1[rows3 - d:] * bot_keep],
        axis=0)

    # ---- conv2 (3x3, dilation d) as one im2col matmul with K = 9P ----
    # W-shifted copies built once (zero strips give the W zero-padding); the
    # ky shifts below are free leading-dim slices of the halo'd rows.
    zcol = jnp.zeros((rows3, d, P), jnp.float32)
    left = jnp.concatenate([zcol, t1[:, :W - d, :]], axis=1)    # t1[., x - d]
    right = jnp.concatenate([t1[:, d:, :], zcol], axis=1)       # t1[., x + d]
    pieces = []
    for ky in range(3):
        r0 = ky * d
        for src in (left, t1, right):                           # kx = 0, 1, 2
            pieces.append(src[r0:r0 + tH])
    patches = jnp.concatenate(pieces, axis=-1)                  # (tH, W, 9P)
    a2 = patches.reshape(tH * W, 9 * P).astype(jnp.bfloat16)
    t2 = jnp.dot(a2, w2_ref[...], preferred_element_type=jnp.float32)
    t2 = jnp.maximum(t2 * s2_ref[...] + b2_ref[...], 0.0)

    # ---- conv3 (1x1) + bn3 ----
    t3 = jnp.dot(t2.astype(jnp.bfloat16), w3_ref[...],
                 preferred_element_type=jnp.float32)
    t3 = t3 * s3_ref[...] + b3_ref[...]

    # ---- residual add + relu ----
    out = jnp.maximum(t3 + xc.reshape(tH * W, Cin), 0.0)
    o_ref[0] = out.reshape(tH, W, Cout).astype(o_ref.dtype)


def _choose_block_rows(H, d, requested):
    """Largest divisor of H that is <= requested and a multiple of d."""
    cand = [t for t in range(1, H + 1)
            if H % t == 0 and t % d == 0 and t <= requested]
    return max(cand) if cand else H


def _vmem_limit_bytes(tH, d, W, Cin, P, Cout):
    rows3 = tH + 2 * d
    f32, bf16 = 4, 2
    est = 0
    est += 2 * (tH * W * Cin + 2 * d * W * Cin) * f32   # double-buffered inputs
    est += 2 * tH * W * Cout * f32                      # double-buffered output
    est += rows3 * W * Cin * (f32 + bf16)               # xin + bf16 operand
    est += 3 * rows3 * W * P * f32                      # t1 / left / right
    est += tH * W * 9 * P * (f32 + bf16)                # im2col patches
    est += tH * W * (P + Cout) * f32                    # t2 / t3
    return int(min(max(2 * est, 32 * 1024 * 1024), 56 * 1024 * 1024))


def bottleneck_v1b(x_nhwc, params, *, dilation=1, block_rows=8):
    """x_nhwc: (N, H, W, Cin) float32. Returns (N, H, W, Cin)."""
    N, H, W, Cin = x_nhwc.shape
    w1, s1, b1, w2_hwio, s2, b2, w3, s3, b3 = params
    P = w1.shape[1]
    Cout = w3.shape[1]
    assert Cout == Cin, "downsample=None requires inplanes == planes * expansion"
    d = dilation
    assert H % d == 0, "dilation must divide H for the halo tiling"

    tH = _choose_block_rows(H, d, block_rows)
    hpb = tH // d            # halo block units per tile
    nblk = H // d            # number of d-row blocks along H

    # bf16 MXU operands (weights converted once, outside the grid).
    w1b = w1.astype(jnp.bfloat16)                       # (Cin, P)
    w2b = w2_hwio.reshape(9 * P, P).astype(jnp.bfloat16)  # tap-major (ky,kx,ci)
    w3b = w3.astype(jnp.bfloat16)                       # (P, Cout)

    def full(a):
        return pl.BlockSpec(a.shape, lambda n, h, nd=a.ndim: (0,) * nd)

    in_specs = [
        # top halo: d rows ending just above this tile (clamped; zeroed in-kernel at h==0)
        pl.BlockSpec((1, d, W, Cin),
                     lambda n, h: (n, jnp.maximum(h * hpb - 1, 0), 0, 0)),
        # center rows of the tile
        pl.BlockSpec((1, tH, W, Cin), lambda n, h: (n, h, 0, 0)),
        # bottom halo: d rows just below this tile (clamped; zeroed at h==last)
        pl.BlockSpec((1, d, W, Cin),
                     lambda n, h: (n, jnp.minimum((h + 1) * hpb, nblk - 1), 0, 0)),
        full(w1b), full(s1), full(b1),
        full(w2b), full(s2), full(b2),
        full(w3b), full(s3), full(b3),
    ]
    out_spec = pl.BlockSpec((1, tH, W, Cout), lambda n, h: (n, h, 0, 0))

    return pl.pallas_call(
        _bottleneck_kernel,
        out_shape=jax.ShapeDtypeStruct((N, H, W, Cout), x_nhwc.dtype),
        grid_spec=pltpu.PrefetchScalarGridSpec(
            num_scalar_prefetch=0,
            grid=(N, H // tH),
            in_specs=in_specs,
            out_specs=out_spec,
        ),
        compiler_params=pltpu.CompilerParams(
            dimension_semantics=("parallel", "parallel"),
            vmem_limit_bytes=_vmem_limit_bytes(tH, d, W, Cin, P, Cout)),
    )(x_nhwc, x_nhwc, x_nhwc, w1b, s1, b1, w2b, s2, b2, w3b, s3, b3)


def _fold_bn(gamma, beta, mean, var, eps=1e-5):
    scale = gamma / jnp.sqrt(var + eps)
    bias = beta - mean * scale
    return scale[None, :], bias[None, :]      # (1, C) for lane broadcast


def _reference(x_nhwc, params, dilation=1):
    """Pure-JAX f32 reference (lax.conv) for correctness checking."""
    w1, s1, b1, w2_hwio, s2, b2, w3, s3, b3 = params
    Cin = x_nhwc.shape[-1]
    P = w1.shape[1]
    Cout = w3.shape[1]
    d = dilation
    dn1 = lax.conv_dimension_numbers(x_nhwc.shape, (1, 1, Cin, P),
                                     ("NHWC", "HWIO", "NHWC"))
    t = lax.conv_general_dilated(x_nhwc, w1.reshape(1, 1, Cin, P),
                                 (1, 1), "VALID", dimension_numbers=dn1)
    t = jax.nn.relu(t * s1[0] + b1[0])
    dn2 = lax.conv_dimension_numbers(t.shape, w2_hwio.shape,
                                     ("NHWC", "HWIO", "NHWC"))
    t = lax.conv_general_dilated(t, w2_hwio, (1, 1), [(d, d), (d, d)],
                                 rhs_dilation=(d, d), dimension_numbers=dn2)
    t = jax.nn.relu(t * s2[0] + b2[0])
    dn3 = lax.conv_dimension_numbers(t.shape, (1, 1, P, Cout),
                                     ("NHWC", "HWIO", "NHWC"))
    t = lax.conv_general_dilated(t, w3.reshape(1, 1, P, Cout),
                                 (1, 1), "VALID", dimension_numbers=dn3)
    t = t * s3[0] + b3[0]
    return jax.nn.relu(t + x_nhwc)


if __name__ == "__main__":
    # Shapes consistent with the module: planes=16, inplanes=4*planes=64.
    N, H, W = 2, 16, 16
    planes = 16
    inplanes = planes * 4          # expansion = 4 -> identity residual matches
    dilation = 1

    key = jax.random.PRNGKey(0)
    ks = jax.random.split(key, 16)

    x_nchw = jax.random.normal(ks[0], (N, inplanes, H, W), jnp.float32)

    # conv weights (matmul-friendly layouts; w2 in HWIO (3,3,P,P))
    w1 = jax.random.normal(ks[1], (inplanes, planes), jnp.float32) * 0.1
    w2 = jax.random.normal(ks[2], (3, 3, planes, planes), jnp.float32) * 0.1
    w3 = jax.random.normal(ks[3], (planes, planes * 4), jnp.float32) * 0.1

    # BN params (inference mode, folded running stats -> scale/bias)
    def bn_params(kg, kb, km, kv, c):
        gamma = 1.0 + 0.1 * jax.random.normal(kg, (c,), jnp.float32)
        beta = 0.1 * jax.random.normal(kb, (c,), jnp.float32)
        mean = 0.1 * jax.random.normal(km, (c,), jnp.float32)
        var = jnp.abs(jax.random.normal(kv, (c,), jnp.float32)) + 0.5
        return _fold_bn(gamma, beta, mean, var)

    s1, b1 = bn_params(ks[4], ks[5], ks[6], ks[7], planes)
    s2, b2 = bn_params(ks[8], ks[9], ks[10], ks[11], planes)
    s3, b3 = bn_params(ks[12], ks[13], ks[14], ks[15], planes * 4)

    params = (w1, s1, b1, w2, s2, b2, w3, s3, b3)

    # NCHW -> NHWC for the kernel (channels -> lanes), back to NCHW afterwards.
    x_nhwc = jnp.transpose(x_nchw, (0, 2, 3, 1))
    out_nhwc = bottleneck_v1b(x_nhwc, params, dilation=dilation, block_rows=8)
    out_nchw = jnp.transpose(out_nhwc, (0, 3, 1, 2))
    jax.block_until_ready(out_nchw)

    ref_nhwc = _reference(x_nhwc, params, dilation=dilation)
    ref_nchw = jnp.transpose(ref_nhwc, (0, 3, 1, 2))
    assert out_nchw.shape == (N, inplanes, H, W)
    # bf16 MXU operands with f32 accumulation -> slightly looser tolerance.
    assert jnp.allclose(out_nchw, ref_nchw, rtol=2e-2, atol=2e-2), (
        float(jnp.max(jnp.abs(out_nchw - ref_nchw))))

    print("KERNEL_OK")
</pallas_src>

<mosaic_0001>
module attributes {stable_mosaic.version = 11 : i64} {
  func.func @_bottleneck_kernel(%arg0: i32, %arg1: i32, %arg2: memref<1x1x16x64xf32, #tpu.memory_space<vmem>>, %arg3: memref<1x8x16x64xf32, #tpu.memory_space<vmem>>, %arg4: memref<1x1x16x64xf32, #tpu.memory_space<vmem>>, %arg5: memref<64x16xbf16, #tpu.memory_space<vmem>>, %arg6: memref<1x16xf32, #tpu.memory_space<vmem>>, %arg7: memref<1x16xf32, #tpu.memory_space<vmem>>, %arg8: memref<144x16xbf16, #tpu.memory_space<vmem>>, %arg9: memref<1x16xf32, #tpu.memory_space<vmem>>, %arg10: memref<1x16xf32, #tpu.memory_space<vmem>>, %arg11: memref<16x64xbf16, #tpu.memory_space<vmem>>, %arg12: memref<1x64xf32, #tpu.memory_space<vmem>>, %arg13: memref<1x64xf32, #tpu.memory_space<vmem>>, %arg14: memref<1x8x16x64xf32, #tpu.memory_space<vmem>>) attributes {dimension_semantics = [#tpu.dimension_semantics<parallel>, #tpu.dimension_semantics<parallel>], iteration_bounds = array<i64: 2, 2>, scalar_prefetch = 0 : i64, scratch_operands = 0 : i64, tpu.core_type = #tpu.core_type<tc>, window_params = [{transform_indices = @transform_0, window_bounds = array<i64: 1, 1, 16, 64>}, {transform_indices = @transform_1, window_bounds = array<i64: 1, 8, 16, 64>}, {transform_indices = @transform_2, window_bounds = array<i64: 1, 1, 16, 64>}, {pipeline_mode = #tpu.pipeline_mode<synchronous>, transform_indices = @transform_3, window_bounds = array<i64: 64, 16>}, {pipeline_mode = #tpu.pipeline_mode<synchronous>, transform_indices = @transform_4, window_bounds = array<i64: 1, 16>}, {pipeline_mode = #tpu.pipeline_mode<synchronous>, transform_indices = @transform_5, window_bounds = array<i64: 1, 16>}, {pipeline_mode = #tpu.pipeline_mode<synchronous>, transform_indices = @transform_6, window_bounds = array<i64: 144, 16>}, {pipeline_mode = #tpu.pipeline_mode<synchronous>, transform_indices = @transform_7, window_bounds = array<i64: 1, 16>}, {pipeline_mode = #tpu.pipeline_mode<synchronous>, transform_indices = @transform_8, window_bounds = array<i64: 1, 16>}, {pipeline_mode = #tpu.pipeline_mode<synchronous>, transform_indices = @transform_9, window_bounds = array<i64: 16, 64>}, {pipeline_mode = #tpu.pipeline_mode<synchronous>, transform_indices = @transform_10, window_bounds = array<i64: 1, 64>}, {pipeline_mode = #tpu.pipeline_mode<synchronous>, transform_indices = @transform_11, window_bounds = array<i64: 1, 64>}, {transform_indices = @transform_12, window_bounds = array<i64: 1, 8, 16, 64>}]} {
    %c0 = arith.constant 0 : index
    %c0_0 = arith.constant 0 : index
    %c0_1 = arith.constant 0 : index
    %c0_2 = arith.constant 0 : index
    %0 = vector.load %arg3[%c0, %c0_0, %c0_1, %c0_2] : memref<1x8x16x64xf32, #tpu.memory_space<vmem>>, vector<1x8x16x64xf32>
    %1 = vector.shape_cast %0 : vector<1x8x16x64xf32> to vector<8x16x64xf32>
    %c0_3 = arith.constant 0 : index
    %c0_4 = arith.constant 0 : index
    %c0_5 = arith.constant 0 : index
    %c0_6 = arith.constant 0 : index
    %2 = vector.load %arg2[%c0_3, %c0_4, %c0_5, %c0_6] : memref<1x1x16x64xf32, #tpu.memory_space<vmem>>, vector<1x1x16x64xf32>
    %3 = vector.shape_cast %2 : vector<1x1x16x64xf32> to vector<1x16x64xf32>
    %c0_7 = arith.constant 0 : index
    %c0_8 = arith.constant 0 : index
    %c0_9 = arith.constant 0 : index
    %c0_10 = arith.constant 0 : index
    %4 = vector.load %arg4[%c0_7, %c0_8, %c0_9, %c0_10] : memref<1x1x16x64xf32, #tpu.memory_space<vmem>>, vector<1x1x16x64xf32>
    %5 = vector.shape_cast %4 : vector<1x1x16x64xf32> to vector<1x16x64xf32>
    %6 = tpu.concatenate %3, %1, %5 in 0 : vector<1x16x64xf32>, vector<8x16x64xf32>, vector<1x16x64xf32> -> vector<10x16x64xf32>
    %7 = vector.shape_cast %6 : vector<10x16x64xf32> to vector<160x64xf32>
    %8 = arith.truncf %7 : vector<160x64xf32> to vector<160x64xbf16>
    %c0_11 = arith.constant 0 : index
    %c0_12 = arith.constant 0 : index
    %9 = vector.load %arg5[%c0_11, %c0_12] : memref<64x16xbf16, #tpu.memory_space<vmem>>, vector<64x16xbf16>
    %cst = arith.constant dense<0.000000e+00> : vector<160x16xf32>
    %10 = tpu.matmul %8, %9, %cst {dimension_numbers = #tpu.dot_dimension_numbers<[1], [0], [0], [1], [0, 0, 1, 1], [], []>} : vector<160x64xbf16>, vector<64x16xbf16>, vector<160x16xf32> -> vector<160x16xf32>
    %c0_13 = arith.constant 0 : index
    %c0_14 = arith.constant 0 : index
    %11 = vector.load %arg6[%c0_13, %c0_14] : memref<1x16xf32, #tpu.memory_space<vmem>>, vector<1x16xf32>
    %12 = vector.broadcast %11 : vector<1x16xf32> to vector<160x16xf32>
    %13 = arith.mulf %10, %12 : vector<160x16xf32>
    %c0_15 = arith.constant 0 : index
    %c0_16 = arith.constant 0 : index
    %14 = vector.load %arg7[%c0_15, %c0_16] : memref<1x16xf32, #tpu.memory_space<vmem>>, vector<1x16xf32>
    %15 = vector.broadcast %14 : vector<1x16xf32> to vector<160x16xf32>
    %16 = arith.addf %13, %15 : vector<160x16xf32>
    %cst_17 = arith.constant 0.000000e+00 : f32
    %17 = vector.broadcast %cst_17 : f32 to vector<160x16xf32>
    %18 = arith.maximumf %16, %17 : vector<160x16xf32>
    %19 = vector.shape_cast %18 : vector<160x16xf32> to vector<10x16x16xf32>
    %c0_i32 = arith.constant 0 : i32
    %20 = arith.cmpi sgt, %arg1, %c0_i32 : i32
    %cst_18 = arith.constant 1.000000e+00 : f32
    %cst_19 = arith.constant 0.000000e+00 : f32
    %21 = arith.select %20, %cst_18, %cst_19 : f32
    %c1_i32 = arith.constant 1 : i32
    %22 = arith.cmpi slt, %arg1, %c1_i32 : i32
    %cst_20 = arith.constant 1.000000e+00 : f32
    %cst_21 = arith.constant 0.000000e+00 : f32
    %23 = arith.select %22, %cst_20, %cst_21 : f32
    %24 = vector.extract_strided_slice %19 {offsets = [0, 0, 0], sizes = [1, 16, 16], strides = [1, 1, 1]} : vector<10x16x16xf32> to vector<1x16x16xf32>
    %25 = vector.broadcast %21 : f32 to vector<1x16x16xf32>
    %26 = arith.mulf %24, %25 : vector<1x16x16xf32>
    %27 = vector.extract_strided_slice %19 {offsets = [1, 0, 0], sizes = [8, 16, 16], strides = [1, 1, 1]} : vector<10x16x16xf32> to vector<8x16x16xf32>
    %28 = vector.extract_strided_slice %19 {offsets = [9, 0, 0], sizes = [1, 16, 16], strides = [1, 1, 1]} : vector<10x16x16xf32> to vector<1x16x16xf32>
    %29 = vector.broadcast %23 : f32 to vector<1x16x16xf32>
    %30 = arith.mulf %28, %29 : vector<1x16x16xf32>
    %31 = tpu.concatenate %26, %27, %30 in 0 : vector<1x16x16xf32>, vector<8x16x16xf32>, vector<1x16x16xf32> -> vector<10x16x16xf32>
    %cst_22 = arith.constant 0.000000e+00 : f32
    %32 = vector.broadcast %cst_22 : f32 to vector<10x1x16xf32>
    %33 = vector.extract_strided_slice %31 {offsets = [0, 0, 0], sizes = [10, 15, 16], strides = [1, 1, 1]} : vector<10x16x16xf32> to vector<10x15x16xf32>
    %34 = tpu.concatenate %32, %33 in 1 : vector<10x1x16xf32>, vector<10x15x16xf32> -> vector<10x16x16xf32>
    %35 = vector.extract_strided_slice %31 {offsets = [0, 1, 0], sizes = [10, 15, 16], strides = [1, 1, 1]} : vector<10x16x16xf32> to vector<10x15x16xf32>
    %36 = tpu.concatenate %35, %32 in 1 : vector<10x15x16xf32>, vector<10x1x16xf32> -> vector<10x16x16xf32>
    %37 = vector.extract_strided_slice %34 {offsets = [0, 0, 0], sizes = [8, 16, 16], strides = [1, 1, 1]} : vector<10x16x16xf32> to vector<8x16x16xf32>
    %38 = vector.extract_strided_slice %31 {offsets = [0, 0, 0], sizes = [8, 16, 16], strides = [1, 1, 1]} : vector<10x16x16xf32> to vector<8x16x16xf32>
    %39 = vector.extract_strided_slice %36 {offsets = [0, 0, 0], sizes = [8, 16, 16], strides = [1, 1, 1]} : vector<10x16x16xf32> to vector<8x16x16xf32>
    %40 = vector.extract_strided_slice %34 {offsets = [1, 0, 0], sizes = [8, 16, 16], strides = [1, 1, 1]} : vector<10x16x16xf32> to vector<8x16x16xf32>
    %41 = vector.extract_strided_slice %31 {offsets = [1, 0, 0], sizes = [8, 16, 16], strides = [1, 1, 1]} : vector<10x16x16xf32> to vector<8x16x16xf32>
    %42 = vector.extract_strided_slice %36 {offsets = [1, 0, 0], sizes = [8, 16, 16], strides = [1, 1, 1]} : vector<10x16x16xf32> to vector<8x16x16xf32>
    %43 = vector.extract_strided_slice %34 {offsets = [2, 0, 0], sizes = [8, 16, 16], strides = [1, 1, 1]} : vector<10x16x16xf32> to vector<8x16x16xf32>
    %44 = vector.extract_strided_slice %31 {offsets = [2, 0, 0], sizes = [8, 16, 16], strides = [1, 1, 1]} : vector<10x16x16xf32> to vector<8x16x16xf32>
    %45 = vector.extract_strided_slice %36 {offsets = [2, 0, 0], sizes = [8, 16, 16], strides = [1, 1, 1]} : vector<10x16x16xf32> to vector<8x16x16xf32>
    %46 = tpu.concatenate %37, %38, %39, %40, %41, %42, %43, %44, %45 in 2 : vector<8x16x16xf32>, vector<8x16x16xf32>, vector<8x16x16xf32>, vector<8x16x16xf32>, vector<8x16x16xf32>, vector<8x16x16xf32>, vector<8x16x16xf32>, vector<8x16x16xf32>, vector<8x16x16xf32> -> vector<8x16x144xf32>
    %47 = vector.shape_cast %46 : vector<8x16x144xf32> to vector<128x144xf32>
    %48 = arith.truncf %47 : vector<128x144xf32> to vector<128x144xbf16>
    %c0_23 = arith.constant 0 : index
    %c0_24 = arith.constant 0 : index
    %49 = vector.load %arg8[%c0_23, %c0_24] : memref<144x16xbf16, #tpu.memory_space<vmem>>, vector<144x16xbf16>
    %cst_25 = arith.constant dense<0.000000e+00> : vector<128x16xf32>
    %50 = tpu.matmul %48, %49, %cst_25 {dimension_numbers = #tpu.dot_dimension_numbers<[1], [0], [0], [1], [0, 0, 1, 1], [], []>} : vector<128x144xbf16>, vector<144x16xbf16>, vector<128x16xf32> -> vector<128x16xf32>
    %c0_26 = arith.constant 0 : index
    %c0_27 = arith.constant 0 : index
    %51 = vector.load %arg9[%c0_26, %c0_27] : memref<1x16xf32, #tpu.memory_space<vmem>>, vector<1x16xf32>
    %52 = vector.broadcast %51 : vector<1x16xf32> to vector<128x16xf32>
    %53 = arith.mulf %50, %52 : vector<128x16xf32>
    %c0_28 = arith.constant 0 : index
    %c0_29 = arith.constant 0 : index
    %54 = vector.load %arg10[%c0_28, %c0_29] : memref<1x16xf32, #tpu.memory_space<vmem>>, vector<1x16xf32>
    %55 = vector.broadcast %54 : vector<1x16xf32> to vector<128x16xf32>
    %56 = arith.addf %53, %55 : vector<128x16xf32>
    %cst_30 = arith.constant 0.000000e+00 : f32
    %57 = vector.broadcast %cst_30 : f32 to vector<128x16xf32>
    %58 = arith.maximumf %56, %57 : vector<128x16xf32>
    %59 = arith.truncf %58 : vector<128x16xf32> to vector<128x16xbf16>
    %c0_31 = arith.constant 0 : index
    %c0_32 = arith.constant 0 : index
    %60 = vector.load %arg11[%c0_31, %c0_32] : memref<16x64xbf16, #tpu.memory_space<vmem>>, vector<16x64xbf16>
    %cst_33 = arith.constant dense<0.000000e+00> : vector<128x64xf32>
    %61 = tpu.matmul %59, %60, %cst_33 {dimension_numbers = #tpu.dot_dimension_numbers<[1], [0], [0], [1], [0, 0, 1, 1], [], []>} : vector<128x16xbf16>, vector<16x64xbf16>, vector<128x64xf32> -> vector<128x64xf32>
    %c0_34 = arith.constant 0 : index
    %c0_35 = arith.constant 0 : index
    %62 = vector.load %arg12[%c0_34, %c0_35] : memref<1x64xf32, #tpu.memory_space<vmem>>, vector<1x64xf32>
    %63 = vector.broadcast %62 : vector<1x64xf32> to vector<128x64xf32>
    %64 = arith.mulf %61, %63 : vector<128x64xf32>
    %c0_36 = arith.constant 0 : index
    %c0_37 = arith.constant 0 : index
    %65 = vector.load %arg13[%c0_36, %c0_37] : memref<1x64xf32, #tpu.memory_space<vmem>>, vector<1x64xf32>
    %66 = vector.broadcast %65 : vector<1x64xf32> to vector<128x64xf32>
    %67 = arith.addf %64, %66 : vector<128x64xf32>
    %68 = vector.shape_cast %1 : vector<8x16x64xf32> to vector<128x64xf32>
    %69 = arith.addf %67, %68 : vector<128x64xf32>
    %cst_38 = arith.constant 0.000000e+00 : f32
    %70 = vector.broadcast %cst_38 : f32 to vector<128x64xf32>
    %71 = arith.maximumf %69, %70 : vector<128x64xf32>
    %72 = vector.shape_cast %71 : vector<128x64xf32> to vector<8x16x64xf32>
    %c0_39 = arith.constant 0 : index
    %c0_40 = arith.constant 0 : index
    %c0_41 = arith.constant 0 : index
    %c0_42 = arith.constant 0 : index
    %73 = vector.load %arg14[%c0_39, %c0_40, %c0_41, %c0_42] : memref<1x8x16x64xf32, #tpu.memory_space<vmem>>, vector<1x8x16x64xf32>
    %74 = vector.shape_cast %73 : vector<1x8x16x64xf32> to vector<8x16x64xf32>
    %75 = vector.shape_cast %72 : vector<8x16x64xf32> to vector<1x8x16x64xf32>
    tpu.vector_store %arg14[%c0_39, %c0_40, %c0_41, %c0_42], %75 {strides = array<i32>} : memref<1x8x16x64xf32, #tpu.memory_space<vmem>>, vector<1x8x16x64xf32>,
    return
  }
  func.func @transform_0(%arg0: i32, %arg1: i32) -> (i32, i32, i32, i32) {
    %c8_i32 = arith.constant 8 : i32
    %0 = arith.muli %arg1, %c8_i32 : i32
    %c1_i32 = arith.constant 1 : i32
    %1 = arith.subi %0, %c1_i32 : i32
    %c0_i32 = arith.constant 0 : i32
    %2 = arith.maxsi %1, %c0_i32 : i32
    %c0_i32_0 = arith.constant 0 : i32
    %c0_i32_1 = arith.constant 0 : i32
    %c0_i32_2 = arith.constant 0 : i32
    return %arg0, %2, %c0_i32_0, %c0_i32_1 : i32, i32, i32, i32
  }
  func.func @transform_1(%arg0: i32, %arg1: i32) -> (i32, i32, i32, i32) {
    %c0_i32 = arith.constant 0 : i32
    %c0_i32_0 = arith.constant 0 : i32
    %c0_i32_1 = arith.constant 0 : i32
    return %arg0, %arg1, %c0_i32, %c0_i32_0 : i32, i32, i32, i32
  }
  func.func @transform_2(%arg0: i32, %arg1: i32) -> (i32, i32, i32, i32) {
    %c1_i32 = arith.constant 1 : i32
    %0 = arith.addi %arg1, %c1_i32 : i32
    %c8_i32 = arith.constant 8 : i32
    %1 = arith.muli %0, %c8_i32 : i32
    %c15_i32 = arith.constant 15 : i32
    %2 = arith.minsi %1, %c15_i32 : i32
    %c0_i32 = arith.constant 0 : i32
    %c0_i32_0 = arith.constant 0 : i32
    %c0_i32_1 = arith.constant 0 : i32
    return %arg0, %2, %c0_i32, %c0_i32_0 : i32, i32, i32, i32
  }
  func.func @transform_3(%arg0: i32, %arg1: i32) -> (i32, i32) {
    %c0_i32 = arith.constant 0 : i32
    %c0_i32_0 = arith.constant 0 : i32
    %c0_i32_1 = arith.constant 0 : i32
    return %c0_i32, %c0_i32_0 : i32, i32
  }
  func.func @transform_4(%arg0: i32, %arg1: i32) -> (i32, i32) {
    %c0_i32 = arith.constant 0 : i32
    %c0_i32_0 = arith.constant 0 : i32
    %c0_i32_1 = arith.constant 0 : i32
    return %c0_i32, %c0_i32_0 : i32, i32
  }
  func.func @transform_5(%arg0: i32, %arg1: i32) -> (i32, i32) {
    %c0_i32 = arith.constant 0 : i32
    %c0_i32_0 = arith.constant 0 : i32
    %c0_i32_1 = arith.constant 0 : i32
    return %c0_i32, %c0_i32_0 : i32, i32
  }
  func.func @transform_6(%arg0: i32, %arg1: i32) -> (i32, i32) {
    %c0_i32 = arith.constant 0 : i32
    %c0_i32_0 = arith.constant 0 : i32
    %c0_i32_1 = arith.constant 0 : i32
    return %c0_i32, %c0_i32_0 : i32, i32
  }
  func.func @transform_7(%arg0: i32, %arg1: i32) -> (i32, i32) {
    %c0_i32 = arith.constant 0 : i32
    %c0_i32_0 = arith.constant 0 : i32
    %c0_i32_1 = arith.constant 0 : i32
    return %c0_i32, %c0_i32_0 : i32, i32
  }
  func.func @transform_8(%arg0: i32, %arg1: i32) -> (i32, i32) {
    %c0_i32 = arith.constant 0 : i32
    %c0_i32_0 = arith.constant 0 : i32
    %c0_i32_1 = arith.constant 0 : i32
    return %c0_i32, %c0_i32_0 : i32, i32
  }
  func.func @transform_9(%arg0: i32, %arg1: i32) -> (i32, i32) {
    %c0_i32 = arith.constant 0 : i32
    %c0_i32_0 = arith.constant 0 : i32
    %c0_i32_1 = arith.constant 0 : i32
    return %c0_i32, %c0_i32_0 : i32, i32
  }
  func.func @transform_10(%arg0: i32, %arg1: i32) -> (i32, i32) {
    %c0_i32 = arith.constant 0 : i32
    %c0_i32_0 = arith.constant 0 : i32
    %c0_i32_1 = arith.constant 0 : i32
    return %c0_i32, %c0_i32_0 : i32, i32
  }
  func.func @transform_11(%arg0: i32, %arg1: i32) -> (i32, i32) {
    %c0_i32 = arith.constant 0 : i32
    %c0_i32_0 = arith.constant 0 : i32
    %c0_i32_1 = arith.constant 0 : i32
    return %c0_i32, %c0_i32_0 : i32, i32
  }
  func.func @transform_12(%arg0: i32, %arg1: i32) -> (i32, i32, i32, i32) {
    %c0_i32 = arith.constant 0 : i32
    %c0_i32_0 = arith.constant 0 : i32
    %c0_i32_1 = arith.constant 0 : i32
    return %arg0, %arg1, %c0_i32, %c0_i32_0 : i32, i32, i32, i32
  }
}

</mosaic_0001>

<llo_original>
// kernel: tpu_custom_call.1
$region0: #{tpu_custom_call.1}
  #allocation0 [shape = 'u32[]', space=smem, size = 0x4, offset = 0x4, fixed_abs, tag = 'smem constant byte address 0x4 - core index']
  #allocation1 [shape = 'u32[144,128]{1,0:T(1,128)}', space=vmem, size = 0x12000, scoped, tag = 'internal scratch']
  %s0 = inlined_call_operand.hbm [shape: f32[2,16,16,64], index: 0, kind: input, shape index: {}]
  %s1 = inlined_call_operand.hbm [shape: f32[2,16,16,64], index: 1, kind: input, shape index: {}]
  %s2 = inlined_call_operand.hbm [shape: f32[2,16,16,64], index: 2, kind: input, shape index: {}]
  %s3 = inlined_call_operand.vmem [shape: bf16[64,16], index: 3, kind: input, shape index: {}]
  %s4 = inlined_call_operand.vmem [shape: f32[1,16], index: 4, kind: input, shape index: {}]
  %s5 = inlined_call_operand.vmem [shape: f32[1,16], index: 5, kind: input, shape index: {}]
  %s6 = inlined_call_operand.vmem [shape: bf16[144,16], index: 6, kind: input, shape index: {}]
  %s7 = inlined_call_operand.vmem [shape: f32[1,16], index: 7, kind: input, shape index: {}]
  %s8 = inlined_call_operand.vmem [shape: f32[1,16], index: 8, kind: input, shape index: {}]
  %s9 = inlined_call_operand.vmem [shape: bf16[16,64], index: 9, kind: input, shape index: {}]
  %s10 = inlined_call_operand.vmem [shape: f32[1,64], index: 10, kind: input, shape index: {}]
  %s11 = inlined_call_operand.vmem [shape: f32[1,64], index: 11, kind: input, shape index: {}]
  %s12 = inlined_call_operand.hbm [shape: f32[2,16,16,64], index: 12, kind: output, shape index: {}]
  %s13 = sld [smem:[#allocation0]]
  $region93: #{tpu_custom_call.1} parent=0
    _
  %s15 = ssub.s32 1, %s13
  %s16 = scalar_select 0, %s15, %s13
  $region1: #{tpu_custom_call.1} parent=0
    #allocation2 [shape = 'u8[16384]{0}', space=vmem, size = 0x4000, scoped, tag = 'input window, operand 0']
    #allocation3 [shape = 's32[2]{0}', space=sflag, size = 0x8, scoped, tag = 'scoped memory for tpu_custom_call.1']
    #allocation4 [shape = 's32[2]{0}', space=sflag, size = 0x8, scoped, tag = 'scoped memory for tpu_custom_call.1']
    #allocation5 [shape = 'u8[131072]{0}', space=vmem, size = 0x20000, scoped, tag = 'input window, operand 1']
    #allocation6 [shape = 's32[2]{0}', space=sflag, size = 0x8, scoped, tag = 'scoped memory for tpu_custom_call.1']
    #allocation7 [shape = 'u8[16384]{0}', space=vmem, size = 0x4000, scoped, tag = 'input window, operand 2']
    #allocation8 [shape = 'u8[131072]{0}', space=vmem, size = 0x20000, scoped, tag = 'output window, operand 0']
    %17 = vsyncpa [#allocation3], 0
    %s18 = scalar_lea.sflag [#allocation3], 1
    %19 = vsyncpa %s18, 0
    %20 = vsyncpa [#allocation6], 0
    %s21 = scalar_lea.sflag [#allocation6], 1
    %22 = vsyncpa %s21, 0
    %23 = vsyncpa [#allocation4], 0
    %s24 = scalar_lea.sflag [#allocation4], 1
    %25 = vsyncpa %s24, 0
    loop: start=0, step=1, limit=6
    $region2: #{tpu_custom_call.1} parent=1 // loop_pre_header
      _
    $region3: #{tpu_custom_call.1} parent=1 // loop_header
      %s27 = sphi 0, %s31
      %p28 = scmp.ge.s32.totalorder %s27, 6
      %s34 = sphi 0, %s46
      %s35 = sphi 0, %s42
      %s36 = sphi 0, %s34
      %s37 = sphi 0, %s35
      %s38 = sphi 0, %s36
      %s39 = sphi 0, %s37
      %s59 = sphi 0, %s61
      %s62 = sphi 0, %s59
      %s63 = sphi 0, %s62
      %s79 = sphi 0, %s63
      %s87 = sphi 0, %s89
      %s90 = sphi 0, %s87
      %s91 = sphi 0, %s90
      %s107 = sphi 0, %s91
      %s123 = sphi 0, %s125
      %s126 = sphi 0, %s123
      %s127 = sphi 0, %s126
      %s143 = sphi 0, %s127
      %s147 = sphi 0, %s147
      %s149 = sphi 0, %s147
      %s150 = sphi 0, %s149
      %s164 = sphi 0, %s150
      %s168 = sphi 0, %s168
      %s170 = sphi 0, %s168
      %s171 = sphi 0, %s170
      %s185 = sphi 0, %s171
      %s189 = sphi 0, %s189
      %s191 = sphi 0, %s189
      %s192 = sphi 0, %s191
      %s206 = sphi 0, %s192
      %s210 = sphi 0, %s210
      %s212 = sphi 0, %s210
      %s213 = sphi 0, %s212
      %s227 = sphi 0, %s213
      %s231 = sphi 0, %s231
      %s233 = sphi 0, %s231
      %s234 = sphi 0, %s233
      %s248 = sphi 0, %s234
      %s252 = sphi 0, %s252
      %s254 = sphi 0, %s252
      %s255 = sphi 0, %s254
      %s269 = sphi 0, %s255
      %s273 = sphi 0, %s273
      %s275 = sphi 0, %s273
      %s276 = sphi 0, %s275
      %s290 = sphi 0, %s276
      %s294 = sphi 0, %s294
      %s296 = sphi 0, %s294
      %s297 = sphi 0, %s296
      %s311 = sphi 0, %s297
      %s315 = sphi 0, %s315
      %s317 = sphi 0, %s315
      %s318 = sphi 0, %s317
      %s332 = sphi 0, %s318
      %s340 = sphi 0, %s342
      %s343 = sphi 0, %s340
      %s344 = sphi 0, %s343
      %s360 = sphi 0, %s344
    $region4: #{tpu_custom_call.1} parent=1 // loop_header_branch
      %30 = sbr.rel (%p28) target = $region8
    $region5: #{tpu_custom_call.1} parent=1 // loop_body
      %s32 = ssub.s32 %s27, 1
      %s33 = ssub.s32 %s27, 2
      %s40 = sadd.s32 1, %s35
      %p41 = scmp.ge.s32.totalorder %s40, 2
      %s42 = scalar_select %p41, 0, %s40
      %s43 = sadd.s32 1, %s34
      %s44 = scalar_select %p41, %s43, %s34
      %p45 = scmp.ge.s32.totalorder %s44, 2
      %s46 = scalar_select %p45, 0, %s44
      %s47 = smul.u32 %s35, 8
      %s48 = ssub.s32 %s47, 1
      %p49 = scmp.gt.s32.totalorder %s48, 0
      %s50 = scalar_select %p49, %s48, 0
      %s51 = smul.u32 %s42, 8
      %s52 = ssub.s32 %s51, 1
      %p53 = scmp.gt.s32.totalorder %s52, 0
      %s54 = scalar_select %p53, %s52, 0
      %s55 = ssub.s32 %s34, %s46
      %s56 = ssub.s32 %s50, %s54
      %s57 = sor.u32 %s55, %s56
      %p58 = scmp.eq.s32.totalorder %s57, 0
      %s60 = sadd.s32 %s59, 1
      %s61 = scalar_select %p58, %s59, %s60
      %p64 = pneg %p58
      %p65 = scmp.eq.s32.totalorder %s27, 3
      %p66 = por %p64, %p65
      %p67 = scmp.ne.s32.totalorder %s59, %s62
      %p68 = scmp.eq.s32.totalorder %s27, 0
      %p69 = por %p67, %p68
      %p70 = scmp.ne.s32.totalorder %s59, %s62
      %p71 = scmp.eq.s32.totalorder %s32, 3
      %p72 = por %p70, %p71
      %p73 = scmp.ne.s32.totalorder %s62, %s63
      %p74 = scmp.eq.s32.totalorder %s32, 0
      %p75 = por %p73, %p74
      %p76 = scmp.ne.s32.totalorder %s62, %s63
      %p77 = scmp.eq.s32.totalorder %s33, 3
      %p78 = por %p76, %p77
      %p80 = scmp.ne.s32.totalorder %s63, %s79
      %p81 = scmp.eq.s32.totalorder %s33, 0
      %p82 = por %p80, %p81
      %s83 = ssub.s32 %s34, %s46
      %s84 = ssub.s32 %s35, %s42
      %s85 = sor.u32 %s83, %s84
      %p86 = scmp.eq.s32.totalorder %s85, 0
      %s88 = sadd.s32 %s87, 1
      %s89 = scalar_select %p86, %s87, %s88
      %p92 = pneg %p86
      %p93 = scmp.eq.s32.totalorder %s27, 3
      %p94 = por %p92, %p93
      %p95 = scmp.ne.s32.totalorder %s87, %s90
      %p96 = scmp.eq.s32.totalorder %s27, 0
      %p97 = por %p95, %p96
      %p98 = scmp.ne.s32.totalorder %s87, %s90
      %p99 = scmp.eq.s32.totalorder %s32, 3
      %p100 = por %p98, %p99
      %p101 = scmp.ne.s32.totalorder %s90, %s91
      %p102 = scmp.eq.s32.totalorder %s32, 0
      %p103 = por %p101, %p102
      %p104 = scmp.ne.s32.totalorder %s90, %s91
      %p105 = scmp.eq.s32.totalorder %s33, 3
      %p106 = por %p104, %p105
      %p108 = scmp.ne.s32.totalorder %s91, %s107
      %p109 = scmp.eq.s32.totalorder %s33, 0
      %p110 = por %p108, %p109
      %s111 = sadd.s32 %s35, 1
      %s112 = smul.u32 %s111, 8
      %p113 = scmp.lt.s32.totalorder %s112, 15
      %s114 = scalar_select %p113, %s112, 15
      %s115 = sadd.s32 %s42, 1
      %s116 = smul.u32 %s115, 8
      %p117 = scmp.lt.s32.totalorder %s116, 15
      %s118 = scalar_select %p117, %s116, 15
      %s119 = ssub.s32 %s34, %s46
      %s120 = ssub.s32 %s114, %s118
      %s121 = sor.u32 %s119, %s120
      %p122 = scmp.eq.s32.totalorder %s121, 0
      %s124 = sadd.s32 %s123, 1
      %s125 = scalar_select %p122, %s123, %s124
      %p128 = pneg %p122
      %p129 = scmp.eq.s32.totalorder %s27, 3
      %p130 = por %p128, %p129
      %p131 = scmp.ne.s32.totalorder %s123, %s126
      %p132 = scmp.eq.s32.totalorder %s27, 0
      %p133 = por %p131, %p132
      %p134 = scmp.ne.s32.totalorder %s123, %s126
      %p135 = scmp.eq.s32.totalorder %s32, 3
      %p136 = por %p134, %p135
      %p137 = scmp.ne.s32.totalorder %s126, %s127
      %p138 = scmp.eq.s32.totalorder %s32, 0
      %p139 = por %p137, %p138
      %p140 = scmp.ne.s32.totalorder %s126, %s127
      %p141 = scmp.eq.s32.totalorder %s33, 3
      %p142 = por %p140, %p141
      %p144 = scmp.ne.s32.totalorder %s127, %s143
      %p145 = scmp.eq.s32.totalorder %s33, 0
      %p146 = por %p144, %p145
      %s148 = sadd.s32 %s147, 1
      %p151 = scmp.eq.s32.totalorder %s27, 3
      %p152 = scmp.ne.s32.totalorder %s147, %s149
      %p153 = scmp.eq.s32.totalorder %s27, 0
      %p154 = por %p152, %p153
      %p155 = scmp.ne.s32.totalorder %s147, %s149
      %p156 = scmp.eq.s32.totalorder %s32, 3
      %p157 = por %p155, %p156
      %p158 = scmp.ne.s32.totalorder %s149, %s150
      %p159 = scmp.eq.s32.totalorder %s32, 0
      %p160 = por %p158, %p159
      %p161 = scmp.ne.s32.totalorder %s149, %s150
      %p162 = scmp.eq.s32.totalorder %s33, 3
      %p163 = por %p161, %p162
      %p165 = scmp.ne.s32.totalorder %s150, %s164
      %p166 = scmp.eq.s32.totalorder %s33, 0
      %p167 = por %p165, %p166
      %s169 = sadd.s32 %s168, 1
      %p172 = scmp.eq.s32.totalorder %s27, 3
      %p173 = scmp.ne.s32.totalorder %s168, %s170
      %p174 = scmp.eq.s32.totalorder %s27, 0
      %p175 = por %p173, %p174
      %p176 = scmp.ne.s32.totalorder %s168, %s170
      %p177 = scmp.eq.s32.totalorder %s32, 3
      %p178 = por %p176, %p177
      %p179 = scmp.ne.s32.totalorder %s170, %s171
      %p180 = scmp.eq.s32.totalorder %s32, 0
      %p181 = por %p179, %p180
      %p182 = scmp.ne.s32.totalorder %s170, %s171
      %p183 = scmp.eq.s32.totalorder %s33, 3
      %p184 = por %p182, %p183
      %p186 = scmp.ne.s32.totalorder %s171, %s185
      %p187 = scmp.eq.s32.totalorder %s33, 0
      %p188 = por %p186, %p187
      %s190 = sadd.s32 %s189, 1
      %p193 = scmp.eq.s32.totalorder %s27, 3
      %p194 = scmp.ne.s32.totalorder %s189, %s191
      %p195 = scmp.eq.s32.totalorder %s27, 0
      %p196 = por %p194, %p195
      %p197 = scmp.ne.s32.totalorder %s189, %s191
      %p198 = scmp.eq.s32.totalorder %s32, 3
      %p199 = por %p197, %p198
      %p200 = scmp.ne.s32.totalorder %s191, %s192
      %p201 = scmp.eq.s32.totalorder %s32, 0
      %p202 = por %p200, %p201
      %p203 = scmp.ne.s32.totalorder %s191, %s192
      %p204 = scmp.eq.s32.totalorder %s33, 3
      %p205 = por %p203, %p204
      %p207 = scmp.ne.s32.totalorder %s192, %s206
      %p208 = scmp.eq.s32.totalorder %s33, 0
      %p209 = por %p207, %p208
      %s211 = sadd.s32 %s210, 1
      %p214 = scmp.eq.s32.totalorder %s27, 3
      %p215 = scmp.ne.s32.totalorder %s210, %s212
      %p216 = scmp.eq.s32.totalorder %s27, 0
      %p217 = por %p215, %p216
      %p218 = scmp.ne.s32.totalorder %s210, %s212
      %p219 = scmp.eq.s32.totalorder %s32, 3
      %p220 = por %p218, %p219
      %p221 = scmp.ne.s32.totalorder %s212, %s213
      %p222 = scmp.eq.s32.totalorder %s32, 0
      %p223 = por %p221, %p222
      %p224 = scmp.ne.s32.totalorder %s212, %s213
      %p225 = scmp.eq.s32.totalorder %s33, 3
      %p226 = por %p224, %p225
      %p228 = scmp.ne.s32.totalorder %s213, %s227
      %p229 = scmp.eq.s32.totalorder %s33, 0
      %p230 = por %p228, %p229
      %s232 = sadd.s32 %s231, 1
      %p235 = scmp.eq.s32.totalorder %s27, 3
      %p236 = scmp.ne.s32.totalorder %s231, %s233
      %p237 = scmp.eq.s32.totalorder %s27, 0
      %p238 = por %p236, %p237
      %p239 = scmp.ne.s32.totalorder %s231, %s233
      %p240 = scmp.eq.s32.totalorder %s32, 3
      %p241 = por %p239, %p240
      %p242 = scmp.ne.s32.totalorder %s233, %s234
      %p243 = scmp.eq.s32.totalorder %s32, 0
      %p244 = por %p242, %p243
      %p245 = scmp.ne.s32.totalorder %s233, %s234
      %p246 = scmp.eq.s32.totalorder %s33, 3
      %p247 = por %p245, %p246
      %p249 = scmp.ne.s32.totalorder %s234, %s248
      %p250 = scmp.eq.s32.totalorder %s33, 0
      %p251 = por %p249, %p250
      %s253 = sadd.s32 %s252, 1
      %p256 = scmp.eq.s32.totalorder %s27, 3
      %p257 = scmp.ne.s32.totalorder %s252, %s254
      %p258 = scmp.eq.s32.totalorder %s27, 0
      %p259 = por %p257, %p258
      %p260 = scmp.ne.s32.totalorder %s252, %s254
      %p261 = scmp.eq.s32.totalorder %s32, 3
      %p262 = por %p260, %p261
      %p263 = scmp.ne.s32.totalorder %s254, %s255
      %p264 = scmp.eq.s32.totalorder %s32, 0
      %p265 = por %p263, %p264
      %p266 = scmp.ne.s32.totalorder %s254, %s255
      %p267 = scmp.eq.s32.totalorder %s33, 3
      %p268 = por %p266, %p267
      %p270 = scmp.ne.s32.totalorder %s255, %s269
      %p271 = scmp.eq.s32.totalorder %s33, 0
      %p272 = por %p270, %p271
      %s274 = sadd.s32 %s273, 1
      %p277 = scmp.eq.s32.totalorder %s27, 3
      %p278 = scmp.ne.s32.totalorder %s273, %s275
      %p279 = scmp.eq.s32.totalorder %s27, 0
      %p280 = por %p278, %p279
      %p281 = scmp.ne.s32.totalorder %s273, %s275
      %p282 = scmp.eq.s32.totalorder %s32, 3
      %p283 = por %p281, %p282
      %p284 = scmp.ne.s32.totalorder %s275, %s276
      %p285 = scmp.eq.s32.totalorder %s32, 0
      %p286 = por %p284, %p285
      %p287 = scmp.ne.s32.totalorder %s275, %s276
      %p288 = scmp.eq.s32.totalorder %s33, 3
      %p289 = por %p287, %p288
      %p291 = scmp.ne.s32.totalorder %s276, %s290
      %p292 = scmp.eq.s32.totalorder %s33, 0
      %p293 = por %p291, %p292
      %s295 = sadd.s32 %s294, 1
      %p298 = scmp.eq.s32.totalorder %s27, 3
      %p299 = scmp.ne.s32.totalorder %s294, %s296
      %p300 = scmp.eq.s32.totalorder %s27, 0
      %p301 = por %p299, %p300
      %p302 = scmp.ne.s32.totalorder %s294, %s296
      %p303 = scmp.eq.s32.totalorder %s32, 3
      %p304 = por %p302, %p303
      %p305 = scmp.ne.s32.totalorder %s296, %s297
      %p306 = scmp.eq.s32.totalorder %s32, 0
      %p307 = por %p305, %p306
      %p308 = scmp.ne.s32.totalorder %s296, %s297
      %p309 = scmp.eq.s32.totalorder %s33, 3
      %p310 = por %p308, %p309
      %p312 = scmp.ne.s32.totalorder %s297, %s311
      %p313 = scmp.eq.s32.totalorder %s33, 0
      %p314 = por %p312, %p313
      %s316 = sadd.s32 %s315, 1
      %p319 = scmp.eq.s32.totalorder %s27, 3
      %p320 = scmp.ne.s32.totalorder %s315, %s317
      %p321 = scmp.eq.s32.totalorder %s27, 0
      %p322 = por %p320, %p321
      %p323 = scmp.ne.s32.totalorder %s315, %s317
      %p324 = scmp.eq.s32.totalorder %s32, 3
      %p325 = por %p323, %p324
      %p326 = scmp.ne.s32.totalorder %s317, %s318
      %p327 = scmp.eq.s32.totalorder %s32, 0
      %p328 = por %p326, %p327
      %p329 = scmp.ne.s32.totalorder %s317, %s318
      %p330 = scmp.eq.s32.totalorder %s33, 3
      %p331 = por %p329, %p330
      %p333 = scmp.ne.s32.totalorder %s318, %s332
      %p334 = scmp.eq.s32.totalorder %s33, 0
      %p335 = por %p333, %p334
      %s336 = ssub.s32 %s34, %s46
      %s337 = ssub.s32 %s35, %s42
      %s338 = sor.u32 %s336, %s337
      %p339 = scmp.eq.s32.totalorder %s338, 0
      %s341 = sadd.s32 %s340, 1
      %s342 = scalar_select %p339, %s340, %s341
      %p345 = pneg %p339
      %p346 = scmp.eq.s32.totalorder %s27, 3
      %p347 = por %p345, %p346
      %p348 = scmp.ne.s32.totalorder %s340, %s343
      %p349 = scmp.eq.s32.totalorder %s27, 0
      %p350 = por %p348, %p349
      %p351 = scmp.ne.s32.totalorder %s340, %s343
      %p352 = scmp.eq.s32.totalorder %s32, 3
      %p353 = por %p351, %p352
      %p354 = scmp.ne.s32.totalorder %s343, %s344
      %p355 = scmp.eq.s32.totalorder %s32, 0
      %p356 = por %p354, %p355
      %p357 = scmp.ne.s32.totalorder %s343, %s344
      %p358 = scmp.eq.s32.totalorder %s33, 3
      %p359 = por %p357, %p358
      %p361 = scmp.ne.s32.totalorder %s344, %s360
      %p362 = scmp.eq.s32.totalorder %s33, 0
      %p363 = por %p361, %p362
      %p364 = scmp.le.s32.totalorder 1, %s27
      %p365 = scmp.lt.s32.totalorder %s27, 5
      %p366 = pnand %p364, %p365
      %p367 = pneg %p366
      // Predicated region
      $region9: #{tpu_custom_call.1} parent=5 // pred_check
        _
      $region10: #{tpu_custom_call.1} parent=5 // pred_check_branch
        %369 = sbr.rel (%p366) target = $region12
      $region11: #{tpu_custom_call.1} parent=5 // pred_region
        %s370 = ssub.s32 %s27, 1
        // Predicated region
        $region13: #{tpu_custom_call.1} parent=11 // pred_check
          %p371 = pneg %p160
        $region14: #{tpu_custom_call.1} parent=11 // pred_check_branch
          %373 = sbr.rel (%p371) target = $region16
        $region15: #{tpu_custom_call.1} parent=11 // pred_region
          _
        $region16: #{tpu_custom_call.1} parent=11 // pred_fallthru
          _
        // Predicated region
        $region17: #{tpu_custom_call.1} parent=11 // pred_check
          %p374 = pneg %p181
        $region18: #{tpu_custom_call.1} parent=11 // pred_check_branch
          %376 = sbr.rel (%p374) target = $region20
        $region19: #{tpu_custom_call.1} parent=11 // pred_region
          _
        $region20: #{tpu_custom_call.1} parent=11 // pred_fallthru
          _
        // Predicated region
        $region21: #{tpu_custom_call.1} parent=11 // pred_check
          %p377 = pneg %p202
        $region22: #{tpu_custom_call.1} parent=11 // pred_check_branch
          %379 = sbr.rel (%p377) target = $region24
        $region23: #{tpu_custom_call.1} parent=11 // pred_region
          _
        $region24: #{tpu_custom_call.1} parent=11 // pred_fallthru
          _
        // Predicated region
        $region25: #{tpu_custom_call.1} parent=11 // pred_check
          %p380 = pneg %p223
        $region26: #{tpu_custom_call.1} parent=11 // pred_check_branch
          %382 = sbr.rel (%p380) target = $region28
        $region27: #{tpu_custom_call.1} parent=11 // pred_region
          _
        $region28: #{tpu_custom_call.1} parent=11 // pred_fallthru
          _
        // Predicated region
        $region29: #{tpu_custom_call.1} parent=11 // pred_check
          %p383 = pneg %p244
        $region30: #{tpu_custom_call.1} parent=11 // pred_check_branch
          %385 = sbr.rel (%p383) target = $region32
        $region31: #{tpu_custom_call.1} parent=11 // pred_region
          _
        $region32: #{tpu_custom_call.1} parent=11 // pred_fallthru
          _
        // Predicated region
        $region33: #{tpu_custom_call.1} parent=11 // pred_check
          %p386 = pneg %p265
        $region34: #{tpu_custom_call.1} parent=11 // pred_check_branch
          %388 = sbr.rel (%p386) target = $region36
        $region35: #{tpu_custom_call.1} parent=11 // pred_region
          _
        $region36: #{tpu_custom_call.1} parent=11 // pred_fallthru
          _
        // Predicated region
        $region37: #{tpu_custom_call.1} parent=11 // pred_check
          %p389 = pneg %p286
        $region38: #{tpu_custom_call.1} parent=11 // pred_check_branch
          %391 = sbr.rel (%p389) target = $region40
        $region39: #{tpu_custom_call.1} parent=11 // pred_region
          _
        $region40: #{tpu_custom_call.1} parent=11 // pred_fallthru
          _
        // Predicated region
        $region41: #{tpu_custom_call.1} parent=11 // pred_check
          %p392 = pneg %p307
        $region42: #{tpu_custom_call.1} parent=11 // pred_check_branch
          %394 = sbr.rel (%p392) target = $region44
        $region43: #{tpu_custom_call.1} parent=11 // pred_region
          _
        $region44: #{tpu_custom_call.1} parent=11 // pred_fallthru
          _
        // Predicated region
        $region45: #{tpu_custom_call.1} parent=11 // pred_check
          %p395 = pneg %p328
        $region46: #{tpu_custom_call.1} parent=11 // pred_check_branch
          %397 = sbr.rel (%p395) target = $region48
        $region47: #{tpu_custom_call.1} parent=11 // pred_region
          _
        $region48: #{tpu_custom_call.1} parent=11 // pred_fallthru
          _
      $region12: #{tpu_custom_call.1} parent=5 // pred_fallthru
        _
      %p398 = scmp.lt.s32.totalorder %s27, 4
      // Predicated region
      $region49: #{tpu_custom_call.1} parent=5 // pred_check
        %p399 = pneg %p398
      $region50: #{tpu_custom_call.1} parent=5 // pred_check_branch
        %401 = sbr.rel (%p399) target = $region52
      $region51: #{tpu_custom_call.1} parent=5 // pred_region
        // Predicated region
        $region53: #{tpu_custom_call.1} parent=51 // pred_check
          %p402 = pneg %p69
        $region54: #{tpu_custom_call.1} parent=51 // pred_check_branch
          %404 = sbr.rel (%p402) target = $region56
        $region55: #{tpu_custom_call.1} parent=51 // pred_region
          %s405 = sand.u32 %s59, 1
          %s406 = scalar_lea.sflag [#allocation3], %s405
          %s407 = sand.u32 %s59, 1
          %s408 = smul.addr %s407, 16
          %s409 = scalar_lea.vmem [#allocation2], %s408
          %s410 = smul.u32 %s35, 8
          %s411 = ssub.s32 %s410, 1
          %p412 = scmp.gt.s32.totalorder %s411, 0
          %s413 = scalar_select %p412, %s411, 0
          %s415 = ssub.s32 256, 256
          %416 = vsyncadd %s406, %s415
          %s417 = smul.addr %s413, 2
          %s418 = smul.addr %s34, 32
          %s419 = sadd.s32 %s417, %s418
          %s420 = smul.addr %s419, 128
          %s421 = scalar_lea.hbm %s0, %s420
          %s422 = sshll.u32 %s409, 4
          %s423 = int_to_ptr.vmem [resolvable:$true] %s422
          %428 = dma.hbm_to_vmem [thread:$0]  %s421, 256, %s423, %s406, 128, 128, 8
        $region56: #{tpu_custom_call.1} parent=51 // pred_fallthru
          _
        // Predicated region
        $region57: #{tpu_custom_call.1} parent=51 // pred_check
          %p429 = pneg %p97
        $region58: #{tpu_custom_call.1} parent=51 // pred_check_branch
          %431 = sbr.rel (%p429) target = $region60
        $region59: #{tpu_custom_call.1} parent=51 // pred_region
          %s432 = sand.u32 %s27, 1
          %s433 = scalar_lea.sflag [#allocation6], %s432
          %s434 = sand.u32 %s87, 1
          %s435 = smul.addr %s434, 128
          %s436 = scalar_lea.vmem [#allocation5], %s435
          %s437 = smul.u32 8, %s35
          %s439 = ssub.s32 2048, 2048
          %440 = vsyncadd %s433, %s439
          %s441 = smul.addr %s437, 2
          %s442 = smul.addr %s34, 32
          %s443 = sadd.s32 %s441, %s442
          %s444 = smul.addr %s443, 128
          %s445 = scalar_lea.hbm %s1, %s444
          %s446 = sshll.u32 %s436, 4
          %s447 = int_to_ptr.vmem [resolvable:$true] %s446
          %452 = dma.hbm_to_vmem [thread:$0]  %s445, 2048, %s447, %s433, 128, 128, 8
        $region60: #{tpu_custom_call.1} parent=51 // pred_fallthru
          _
        // Predicated region
        $region61: #{tpu_custom_call.1} parent=51 // pred_check
          %p453 = pneg %p133
        $region62: #{tpu_custom_call.1} parent=51 // pred_check_branch
          %455 = sbr.rel (%p453) target = $region64
        $region63: #{tpu_custom_call.1} parent=51 // pred_region
          %s456 = sand.u32 %s27, 1
          %s457 = scalar_lea.sflag [#allocation6], %s456
          %s458 = sand.u32 %s123, 1
          %s459 = smul.addr %s458, 16
          %s460 = scalar_lea.vmem [#allocation7], %s459
          %s461 = sadd.s32 %s35, 1
          %s462 = smul.u32 %s461, 8
          %p463 = scmp.lt.s32.totalorder %s462, 15
          %s464 = scalar_select %p463, %s462, 15
          %s466 = ssub.s32 256, 256
          %467 = vsyncadd %s457, %s466
          %s468 = smul.addr %s464, 2
          %s469 = smul.addr %s34, 32
          %s470 = sadd.s32 %s468, %s469
          %s471 = smul.addr %s470, 128
          %s472 = scalar_lea.hbm %s2, %s471
          %s473 = sshll.u32 %s460, 4
          %s474 = int_to_ptr.vmem [resolvable:$true] %s473
          %479 = dma.hbm_to_vmem [thread:$0]  %s472, 256, %s474, %s457, 128, 128, 8
        $region64: #{tpu_custom_call.1} parent=51 // pred_fallthru
          _
      $region52: #{tpu_custom_call.1} parent=5 // pred_fallthru
        _
      %p480 = scmp.le.s32.totalorder 1, %s27
      %p481 = scmp.lt.s32.totalorder %s27, 5
      %p482 = pnand %p480, %p481
      %p483 = pneg %p482
      // Predicated region
      $region65: #{tpu_custom_call.1} parent=5 // pred_check
        _
      $region66: #{tpu_custom_call.1} parent=5 // pred_check_branch
        %485 = sbr.rel (%p482) target = $region68
      $region67: #{tpu_custom_call.1} parent=5 // pred_region
        %s486 = ssub.s32 %s27, 1
        %s487 = sand.u32 %s62, 1
        %s488 = scalar_lea.sflag [#allocation3], %s487
        %s489 = sand.u32 %s62, 1
        %s490 = smul.addr %s489, 16
        %s491 = scalar_lea.vmem [#allocation2], %s490
        // Predicated region
        $region69: #{tpu_custom_call.1} parent=67 // pred_check
          %p492 = pneg %p75
        $region70: #{tpu_custom_call.1} parent=67 // pred_check_branch
          %494 = sbr.rel (%p492) target = $region72
        $region71: #{tpu_custom_call.1} parent=67 // pred_region
          %495 = dma.done %s488, 256
        $region72: #{tpu_custom_call.1} parent=67 // pred_fallthru
          _
        %s496 = sand.u32 %s32, 1
        %s497 = scalar_lea.sflag [#allocation6], %s496
        %s498 = sand.u32 %s90, 1
        %s499 = smul.addr %s498, 128
        %s500 = scalar_lea.vmem [#allocation5], %s499
        // Predicated region
        $region73: #{tpu_custom_call.1} parent=67 // pred_check
          %p501 = pneg %p103
        $region74: #{tpu_custom_call.1} parent=67 // pred_check_branch
          %503 = sbr.rel (%p501) target = $region76
        $region75: #{tpu_custom_call.1} parent=67 // pred_region
          %504 = dma.done %s497, 2048
        $region76: #{tpu_custom_call.1} parent=67 // pred_fallthru
          _
        %s505 = sand.u32 %s32, 1
        %s506 = scalar_lea.sflag [#allocation6], %s505
        %s507 = sand.u32 %s126, 1
        %s508 = smul.addr %s507, 16
        %s509 = scalar_lea.vmem [#allocation7], %s508
        // Predicated region
        $region77: #{tpu_custom_call.1} parent=67 // pred_check
          %p510 = pneg %p139
        $region78: #{tpu_custom_call.1} parent=67 // pred_check_branch
          %512 = sbr.rel (%p510) target = $region80
        $region79: #{tpu_custom_call.1} parent=67 // pred_region
          %513 = dma.done %s506, 256
        $region80: #{tpu_custom_call.1} parent=67 // pred_fallthru
          _
        %s514 = sand.u32 %s62, 1
        %s515 = scalar_lea.sflag [#allocation3], %s514
        %s516 = sand.u32 %s62, 1
        %s517 = smul.addr %s516, 16
        %s518 = scalar_lea.vmem [#allocation2], %s517
        %p519 = pneg %p75
        %p520 = pneg %p72
        %s521 = sand.u32 %s32, 1
        %s522 = scalar_lea.sflag [#allocation6], %s521
        %s523 = sand.u32 %s90, 1
        %s524 = smul.addr %s523, 128
        %s525 = scalar_lea.vmem [#allocation5], %s524
        %p526 = pneg %p103
        %p527 = pneg %p100
        %s528 = sand.u32 %s32, 1
        %s529 = scalar_lea.sflag [#allocation6], %s528
        %s530 = sand.u32 %s126, 1
        %s531 = smul.addr %s530, 16
        %s532 = scalar_lea.vmem [#allocation7], %s531
        %p533 = pneg %p139
        %p534 = pneg %p136
        %p535 = pneg %p160
        %p536 = pneg %p157
        %p537 = pneg %p181
        %p538 = pneg %p178
        %p539 = pneg %p202
        %p540 = pneg %p199
        %p541 = pneg %p223
        %p542 = pneg %p220
        %p543 = pneg %p244
        %p544 = pneg %p241
        %p545 = pneg %p265
        %p546 = pneg %p262
        %p547 = pneg %p286
        %p548 = pneg %p283
        %p549 = pneg %p307
        %p550 = pneg %p304
        %p551 = pneg %p328
        %p552 = pneg %p325
        %p553 = pneg %p356
        %p554 = pneg %p353
        %s555 = sand.u32 %s343, 1
        %s556 = scalar_lea.sflag [#allocation4], %s555
        %s557 = sand.u32 %s343, 1
        %s558 = smul.addr %s557, 128
        %s559 = scalar_lea.vmem [#allocation8], %s558
        %s560 = smul.u32 %s37, 8
        %s561 = ssub.s32 %s560, 1
        %p562 = scmp.gt.s32.totalorder %s561, 0
        %s563 = scalar_select %p562, %s561, 0
        %s564 = smul.u32 8, %s37
        %s565 = sadd.s32 %s37, 1
        %s566 = smul.u32 %s565, 8
        %p567 = scmp.lt.s32.totalorder %s566, 15
        %s568 = scalar_select %p567, %s566, 15
        %s569 = smul.u32 8, %s37
        %v571 = vld [vmem:[%s500] sm:$0xff]
        %v572 = vld [vmem:[%s500 + $0x8] sm:$0xff]
        %v573 = vld [vmem:[%s500 + $0x10] sm:$0xff]
        %v574 = vld [vmem:[%s500 + $0x18] sm:$0xff]
        %v575 = vld [vmem:[%s500 + $0x20] sm:$0xff]
        %v576 = vld [vmem:[%s500 + $0x28] sm:$0xff]
        %v577 = vld [vmem:[%s500 + $0x30] sm:$0xff]
        %v578 = vld [vmem:[%s500 + $0x38] sm:$0xff]
        %v579 = vld [vmem:[%s500 + $0x40] sm:$0xff]
        %v580 = vld [vmem:[%s500 + $0x48] sm:$0xff]
        %v581 = vld [vmem:[%s500 + $0x50] sm:$0xff]
        %v582 = vld [vmem:[%s500 + $0x58] sm:$0xff]
        %v583 = vld [vmem:[%s500 + $0x60] sm:$0xff]
        %v584 = vld [vmem:[%s500 + $0x68] sm:$0xff]
        %v585 = vld [vmem:[%s500 + $0x70] sm:$0xff]
        %v586 = vld [vmem:[%s500 + $0x78] sm:$0xff]
        %v587 = vld [vmem:[%s491] sm:$0xff]
        %v588 = vld [vmem:[%s491 + $0x8] sm:$0xff]
        %v589 = vld [vmem:[%s509] sm:$0xff]
        %v590 = vld [vmem:[%s509 + $0x8] sm:$0xff]
        %v591 = vpack.c.bf16 %v588, %v587
        %v592 = vpack.c.bf16 %v572, %v571
        %v593 = vpack.c.bf16 %v574, %v573
        %v594 = vpack.c.bf16 %v576, %v575
        %v595 = vpack.c.bf16 %v578, %v577
        %v596 = vpack.c.bf16 %v580, %v579
        %v597 = vpack.c.bf16 %v582, %v581
        %v598 = vpack.c.bf16 %v584, %v583
        %v599 = vpack.c.bf16 %v586, %v585
        %v600 = vpack.c.bf16 %v590, %v589
        %v601 = vld [vmem:[%s3] sm:$0xf]
        %v602 = vld [vmem:[%s3 + $0x4] sm:$0xf]
        %v603 = vld [vmem:[%s3 + $0x8] sm:$0xf]
        %v604 = vld [vmem:[%s3 + $0xc] sm:$0xf]
        %v605 = vld [vmem:[%s3 + $0x10] sm:$0xf]
        %v606 = vld [vmem:[%s3 + $0x14] sm:$0xf]
        %v607 = vld [vmem:[%s3 + $0x18] sm:$0xf]
        %v608 = vld [vmem:[%s3 + $0x1c] sm:$0xf]
        %v617 = vunpack.c.l.b16 %v601
        %v618 = vunpack.c.l.b16 %v602
        %v619 = vunpack.c.l.b16 %v603
        %v620 = vunpack.c.l.b16 %v604
        %v621 = vunpack.c.l.b16 %v605
        %v622 = vunpack.c.l.b16 %v606
        %v623 = vunpack.c.l.b16 %v607
        %v624 = vunpack.c.l.b16 %v608
        %v625 = vpack.c.b16 %v618, %v617
        %v626 = vpack.c.b16 %v620, %v619
        %v627 = vpack.c.b16 %v622, %v621
        %v628 = vpack.c.b16 %v624, %v623
        %vm633 = vcmask 523264
        %v635 = vsel %vm633, %v591, 0
        %v638 = vsel %vm633, %v592, 0
        %v641 = vsel %vm633, %v593, 0
        %v644 = vsel %vm633, %v594, 0
        %v647 = vsel %vm633, %v595, 0
        %v650 = vsel %vm633, %v596, 0
        %v653 = vsel %vm633, %v597, 0
        %v656 = vsel %vm633, %v598, 0
        %v659 = vsel %vm633, %v599, 0
        %v662 = vsel %vm633, %v600, 0
        %664 = vmatprep.subr.bf16.mxu0 0
        %665 = vmatpush1.bf16.msra.mxu0 0
        %666 = vmatprep.subr.bf16.mxu0 0
        %667 = vmatpush1.bf16.msra.mxu0 0
        %668 = vmatprep.subr.bf16.mxu0 0
        %669 = vmatpush1.bf16.msra.mxu0 0
        %670 = vmatprep.subr.bf16.mxu0 0
        %671 = vmatpush1.bf16.msra.mxu0 0
        %672 = vmatprep.subr.bf16.mxu0 0
        %673 = vmatpush1.bf16.msra.mxu0 %v628
        %674 = vmatprep.subr.bf16.mxu0 0
        %675 = vmatpush1.bf16.msra.mxu0 %v627
        %676 = vmatprep.subr.bf16.mxu0 0
        %677 = vmatpush1.bf16.msra.mxu0 %v626
        %678 = vmatprep.subr.bf16.mxu0 0
        %679 = vmatpush1.bf16.msra.mxu0 %v625
        %680 = vmatprep.subr.bf16.mxu0 0
        %681 = vmatpush2.bf16.msra.mxu0 0
        %682 = vmatprep.subr.bf16.mxu0 0
        %683 = vmatpush2.bf16.msra.mxu0 0
        %684 = vmatprep.subr.bf16.mxu0 0
        %685 = vmatpush2.bf16.msra.mxu0 0
        %686 = vmatprep.subr.bf16.mxu0 0
        %687 = vmatpush2.bf16.msra.mxu0 0
        %688 = vmatprep.subr.bf16.mxu0 0
        %689 = vmatpush2.bf16.msra.mxu0 0
        %690 = vmatprep.subr.bf16.mxu0 0
        %691 = vmatpush2.bf16.msra.mxu0 0
        %692 = vmatprep.subr.bf16.mxu0 0
        %693 = vmatpush2.bf16.msra.mxu0 0
        %694 = vmatprep.subr.bf16.mxu0 0
        %695 = vmatpush2.bf16.msra.mxu0 0
        %696 = vmatprep.mubr.bf16.mxu0 0
        %697 = vmatmul.mubr.bf16.gmra.mxu0 %v635
        %v698 = vpop.f32.mrf.mxu0
        %v699 = vadd.f32 0.0, %v698
        %v700 = vpop.f32.mrf.mxu0
        %v701 = vpop.f32.mrf.mxu0
        %v702 = vadd.f32 0.0, %v701
        %v703 = vpop.f32.mrf.mxu0
        %704 = vmatprep.mubr.bf16.mxu0 0
        %705 = vmatmul.mubr.bf16.gmra.mxu0 %v638
        %v706 = vpop.f32.mrf.mxu0
        %v707 = vadd.f32 0.0, %v706
        %v708 = vpop.f32.mrf.mxu0
        %v709 = vpop.f32.mrf.mxu0
        %v710 = vadd.f32 0.0, %v709
        %v711 = vpop.f32.mrf.mxu0
        %712 = vmatprep.mubr.bf16.mxu0 0
        %713 = vmatmul.mubr.bf16.gmra.mxu0 %v641
        %v714 = vpop.f32.mrf.mxu0
        %v715 = vadd.f32 0.0, %v714
        %v716 = vpop.f32.mrf.mxu0
        %v717 = vpop.f32.mrf.mxu0
        %v718 = vadd.f32 0.0, %v717
        %v719 = vpop.f32.mrf.mxu0
        %720 = vmatprep.mubr.bf16.mxu0 0
        %721 = vmatmul.mubr.bf16.gmra.mxu0 %v644
        %v722 = vpop.f32.mrf.mxu0
        %v723 = vadd.f32 0.0, %v722
        %v724 = vpop.f32.mrf.mxu0
        %v725 = vpop.f32.mrf.mxu0
        %v726 = vadd.f32 0.0, %v725
        %v727 = vpop.f32.mrf.mxu0
        %728 = vmatprep.mubr.bf16.mxu0 0
        %729 = vmatmul.mubr.bf16.gmra.mxu0 %v647
        %v730 = vpop.f32.mrf.mxu0
        %v731 = vadd.f32 0.0, %v730
        %v732 = vpop.f32.mrf.mxu0
        %v733 = vpop.f32.mrf.mxu0
        %v734 = vadd.f32 0.0, %v733
        %v735 = vpop.f32.mrf.mxu0
        %736 = vmatprep.mubr.bf16.mxu0 0
        %737 = vmatmul.mubr.bf16.gmra.mxu0 %v650
        %v738 = vpop.f32.mrf.mxu0
        %v739 = vadd.f32 0.0, %v738
        %v740 = vpop.f32.mrf.mxu0
        %v741 = vpop.f32.mrf.mxu0
        %v742 = vadd.f32 0.0, %v741
        %v743 = vpop.f32.mrf.mxu0
        %744 = vmatprep.mubr.bf16.mxu0 0
        %745 = vmatmul.mubr.bf16.gmra.mxu0 %v653
        %v746 = vpop.f32.mrf.mxu0
        %v747 = vadd.f32 0.0, %v746
        %v748 = vpop.f32.mrf.mxu0
        %v749 = vpop.f32.mrf.mxu0
        %v750 = vadd.f32 0.0, %v749
        %v751 = vpop.f32.mrf.mxu0
        %752 = vmatprep.mubr.bf16.mxu0 0
        %753 = vmatmul.mubr.bf16.gmra.mxu0 %v656
        %v754 = vpop.f32.mrf.mxu0
        %v755 = vadd.f32 0.0, %v754
        %v756 = vpop.f32.mrf.mxu0
        %v757 = vpop.f32.mrf.mxu0
        %v758 = vadd.f32 0.0, %v757
        %v759 = vpop.f32.mrf.mxu0
        %760 = vmatprep.mubr.bf16.mxu0 0
        %761 = vmatmul.mubr.bf16.gmra.mxu0 %v659
        %v762 = vpop.f32.mrf.mxu0
        %v763 = vadd.f32 0.0, %v762
        %v764 = vpop.f32.mrf.mxu0
        %v765 = vpop.f32.mrf.mxu0
        %v766 = vadd.f32 0.0, %v765
        %v767 = vpop.f32.mrf.mxu0
        %768 = vmatprep.mubr.bf16.mxu0 0
        %769 = vmatmul.mubr.bf16.gmra.mxu0 %v662
        %v770 = vpop.f32.mrf.mxu0
        %v771 = vadd.f32 0.0, %v770
        %v772 = vpop.f32.mrf.mxu0
        %v773 = vpop.f32.mrf.mxu0
        %v774 = vadd.f32 0.0, %v773
        %v775 = vpop.f32.mrf.mxu0
        %776 = vdwg.mxu0
        %v777 = vld [vmem:[%s4] sm:$0x1]
        %v779 = vlaneseq
        %v780 = vshrl.u32 %v779, 7
        %v781 = vsub.s32 0, %v780
        %v782 = vrot.slane %v777, %v781
        %v784 = vmul.f32 %v699, %v782
        %v785 = vmul.f32 %v702, %v782
        %v786 = vmul.f32 %v707, %v782
        %v787 = vmul.f32 %v710, %v782
        %v788 = vmul.f32 %v715, %v782
        %v789 = vmul.f32 %v718, %v782
        %v790 = vmul.f32 %v723, %v782
        %v791 = vmul.f32 %v726, %v782
        %v792 = vmul.f32 %v731, %v782
        %v793 = vmul.f32 %v734, %v782
        %v794 = vmul.f32 %v739, %v782
        %v795 = vmul.f32 %v742, %v782
        %v796 = vmul.f32 %v747, %v782
        %v797 = vmul.f32 %v750, %v782
        %v798 = vmul.f32 %v755, %v782
        %v799 = vmul.f32 %v758, %v782
        %v800 = vmul.f32 %v763, %v782
        %v801 = vmul.f32 %v766, %v782
        %v802 = vmul.f32 %v771, %v782
        %v803 = vmul.f32 %v774, %v782
        %v804 = vld [vmem:[%s5] sm:$0x1]
        %v806 = vlaneseq
        %v807 = vshrl.u32 %v806, 7
        %v808 = vsub.s32 0, %v807
        %v809 = vrot.slane %v804, %v808
        %v811 = vadd.f32 %v784, %v809
        %v812 = vadd.f32 %v785, %v809
        %v813 = vadd.f32 %v786, %v809
        %v814 = vadd.f32 %v787, %v809
        %v815 = vadd.f32 %v788, %v809
        %v816 = vadd.f32 %v789, %v809
        %v817 = vadd.f32 %v790, %v809
        %v818 = vadd.f32 %v791, %v809
        %v819 = vadd.f32 %v792, %v809
        %v820 = vadd.f32 %v793, %v809
        %v821 = vadd.f32 %v794, %v809
        %v822 = vadd.f32 %v795, %v809
        %v823 = vadd.f32 %v796, %v809
        %v824 = vadd.f32 %v797, %v809
        %v825 = vadd.f32 %v798, %v809
        %v826 = vadd.f32 %v799, %v809
        %v827 = vadd.f32 %v800, %v809
        %v828 = vadd.f32 %v801, %v809
        %v829 = vadd.f32 %v802, %v809
        %v830 = vadd.f32 %v803, %v809
        %v831 = vmax.f32 %v811, 0.0
        %v832 = vmax.f32 %v812, 0.0
        %v833 = vmax.f32 %v813, 0.0
        %v834 = vmax.f32 %v814, 0.0
        %v835 = vmax.f32 %v815, 0.0
        %v836 = vmax.f32 %v816, 0.0
        %v837 = vmax.f32 %v817, 0.0
        %v838 = vmax.f32 %v818, 0.0
        %v839 = vmax.f32 %v819, 0.0
        %v840 = vmax.f32 %v820, 0.0
        %v841 = vmax.f32 %v821, 0.0
        %v842 = vmax.f32 %v822, 0.0
        %v843 = vmax.f32 %v823, 0.0
        %v844 = vmax.f32 %v824, 0.0
        %v845 = vmax.f32 %v825, 0.0
        %v846 = vmax.f32 %v826, 0.0
        %v847 = vmax.f32 %v827, 0.0
        %v848 = vmax.f32 %v828, 0.0
        %v849 = vmax.f32 %v829, 0.0
        %v850 = vmax.f32 %v830, 0.0
        %p851 = scmp.gt.s32.totalorder %s37, 0
        %s852 = scalar_select %p851, 1.0, 0.0
        %p853 = scmp.lt.s32.totalorder %s37, 1
        %s854 = scalar_select %p853, 1.0, 0.0
        %v855 = vstv %s852
        %v856 = vmul.f32 %v831, %v855
        %v857 = vmul.f32 %v832, %v855
        %v858 = vstv %s854
        %v859 = vmul.f32 %v849, %v858
        %v860 = vmul.f32 %v850, %v858
        %vm881 = vcmask 1040384
        %v882 = vrot.slane %v856, 7
        %v883 = vrot.slane %v857, 7
        %v884 = vsel %vm881, %v882, %v883
        %v885 = vrot.slane %v833, 7
        %v886 = vrot.slane %v834, 7
        %v887 = vsel %vm881, %v885, %v886
        %v888 = vrot.slane %v835, 7
        %v889 = vrot.slane %v836, 7
        %v890 = vsel %vm881, %v888, %v889
        %v891 = vrot.slane %v837, 7
        %v892 = vrot.slane %v838, 7
        %v893 = vsel %vm881, %v891, %v892
        %v894 = vrot.slane %v839, 7
        %v895 = vrot.slane %v840, 7
        %v896 = vsel %vm881, %v894, %v895
        %v897 = vrot.slane %v841, 7
        %v898 = vrot.slane %v842, 7
        %v899 = vsel %vm881, %v897, %v898
        %v900 = vrot.slane %v843, 7
        %v901 = vrot.slane %v844, 7
        %v902 = vsel %vm881, %v900, %v901
        %v903 = vrot.slane %v845, 7
        %v904 = vrot.slane %v846, 7
        %v905 = vsel %vm881, %v903, %v904
        %v906 = vrot.slane %v847, 7
        %v907 = vrot.slane %v848, 7
        %v908 = vsel %vm881, %v906, %v907
        %v909 = vrot.slane %v859, 7
        %v910 = vrot.slane %v860, 7
        %v911 = vsel %vm881, %v909, %v910
        %v930 = vsel %vm881, 0.0, %v882
        %v931 = vsel %vm881, 0.0, %v885
        %v932 = vsel %vm881, 0.0, %v888
        %v933 = vsel %vm881, 0.0, %v891
        %v934 = vsel %vm881, 0.0, %v894
        %v935 = vsel %vm881, 0.0, %v897
        %v936 = vsel %vm881, 0.0, %v900
        %v937 = vsel %vm881, 0.0, %v903
        %v938 = vsel %vm881, 0.0, %v906
        %v939 = vsel %vm881, 0.0, %v909
        %vm940 = vcmask 1046528
        %v941 = vrot.slane %v856, 1
        %v942 = vrot.slane %v857, 1
        %v943 = vsel %vm940, %v941, %v942
        %v944 = vrot.slane %v833, 1
        %v945 = vrot.slane %v834, 1
        %v946 = vsel %vm940, %v944, %v945
        %v947 = vrot.slane %v835, 1
        %v948 = vrot.slane %v836, 1
        %v949 = vsel %vm940, %v947, %v948
        %v950 = vrot.slane %v837, 1
        %v951 = vrot.slane %v838, 1
        %v952 = vsel %vm940, %v950, %v951
        %v953 = vrot.slane %v839, 1
        %v954 = vrot.slane %v840, 1
        %v955 = vsel %vm940, %v953, %v954
        %v956 = vrot.slane %v841, 1
        %v957 = vrot.slane %v842, 1
        %v958 = vsel %vm940, %v956, %v957
        %v959 = vrot.slane %v843, 1
        %v960 = vrot.slane %v844, 1
        %v961 = vsel %vm940, %v959, %v960
        %v962 = vrot.slane %v845, 1
        %v963 = vrot.slane %v846, 1
        %v964 = vsel %vm940, %v962, %v963
        %v965 = vrot.slane %v847, 1
        %v966 = vrot.slane %v848, 1
        %v967 = vsel %vm940, %v965, %v966
        %v968 = vrot.slane %v859, 1
        %v969 = vrot.slane %v860, 1
        %v970 = vsel %vm940, %v968, %v969
        %v989 = vsel %vm940, %v942, 0.0
        %v990 = vsel %vm940, %v945, 0.0
        %v991 = vsel %vm940, %v948, 0.0
        %v992 = vsel %vm940, %v951, 0.0
        %v993 = vsel %vm940, %v954, 0.0
        %v994 = vsel %vm940, %v957, 0.0
        %v995 = vsel %vm940, %v960, 0.0
        %v996 = vsel %vm940, %v963, 0.0
        %v997 = vsel %vm940, %v966, 0.0
        %v998 = vsel %vm940, %v969, 0.0
        %999 = vrot.lane.b32.xlu0 %v856, 16
        %v1000 = vpop.permute.xlu0 %999
        %1001 = vrot.lane.b32.xlu0 %v857, 16
        %v1002 = vpop.permute.xlu0 %1001
        %1003 = vrot.lane.b32.xlu0 %v833, 16
        %v1004 = vpop.permute.xlu0 %1003
        %1005 = vrot.lane.b32.xlu0 %v834, 16
        %v1006 = vpop.permute.xlu0 %1005
        %1007 = vrot.lane.b32.xlu0 %v835, 16
        %v1008 = vpop.permute.xlu0 %1007
        %1009 = vrot.lane.b32.xlu0 %v836, 16
        %v1010 = vpop.permute.xlu0 %1009
        %1011 = vrot.lane.b32.xlu0 %v837, 16
        %v1012 = vpop.permute.xlu0 %1011
        %1013 = vrot.lane.b32.xlu0 %v838, 16
        %v1014 = vpop.permute.xlu0 %1013
        %1015 = vrot.lane.b32.xlu0 %v839, 16
        %v1016 = vpop.permute.xlu0 %1015
        %1017 = vrot.lane.b32.xlu0 %v840, 16
        %v1018 = vpop.permute.xlu0 %1017
        %1019 = vrot.lane.b32.xlu0 %v841, 16
        %v1020 = vpop.permute.xlu0 %1019
        %1021 = vrot.lane.b32.xlu0 %v842, 16
        %v1022 = vpop.permute.xlu0 %1021
        %1023 = vrot.lane.b32.xlu0 %v843, 16
        %v1024 = vpop.permute.xlu0 %1023
        %1025 = vrot.lane.b32.xlu0 %v844, 16
        %v1026 = vpop.permute.xlu0 %1025
        %1027 = vrot.lane.b32.xlu0 %v845, 16
        %v1028 = vpop.permute.xlu0 %1027
        %1029 = vrot.lane.b32.xlu0 %v846, 16
        %v1030 = vpop.permute.xlu0 %1029
        %1055 = vrot.lane.b32.xlu0 %v943, 32
        %v1056 = vpop.permute.xlu0 %1055
        %1057 = vrot.lane.b32.xlu0 %v989, 32
        %v1058 = vpop.permute.xlu0 %1057
        %1059 = vrot.lane.b32.xlu0 %v946, 32
        %v1060 = vpop.permute.xlu0 %1059
        %1061 = vrot.lane.b32.xlu0 %v990, 32
        %v1062 = vpop.permute.xlu0 %1061
        %1063 = vrot.lane.b32.xlu0 %v949, 32
        %v1064 = vpop.permute.xlu0 %1063
        %1065 = vrot.lane.b32.xlu0 %v991, 32
        %v1066 = vpop.permute.xlu0 %1065
        %1067 = vrot.lane.b32.xlu0 %v952, 32
        %v1068 = vpop.permute.xlu0 %1067
        %1069 = vrot.lane.b32.xlu0 %v992, 32
        %v1070 = vpop.permute.xlu0 %1069
        %1071 = vrot.lane.b32.xlu0 %v955, 32
        %v1072 = vpop.permute.xlu0 %1071
        %1073 = vrot.lane.b32.xlu0 %v993, 32
        %v1074 = vpop.permute.xlu0 %1073
        %1075 = vrot.lane.b32.xlu0 %v958, 32
        %v1076 = vpop.permute.xlu0 %1075
        %1077 = vrot.lane.b32.xlu0 %v994, 32
        %v1078 = vpop.permute.xlu0 %1077
        %1079 = vrot.lane.b32.xlu0 %v961, 32
        %v1080 = vpop.permute.xlu0 %1079
        %1081 = vrot.lane.b32.xlu0 %v995, 32
        %v1082 = vpop.permute.xlu0 %1081
        %1083 = vrot.lane.b32.xlu0 %v964, 32
        %v1084 = vpop.permute.xlu0 %1083
        %1085 = vrot.lane.b32.xlu0 %v996, 32
        %v1086 = vpop.permute.xlu0 %1085
        %1111 = vrot.lane.b32.xlu0 %v931, 48
        %v1112 = vpop.permute.xlu0 %1111
        %1113 = vrot.lane.b32.xlu0 %v887, 48
        %v1114 = vpop.permute.xlu0 %1113
        %1115 = vrot.lane.b32.xlu0 %v932, 48
        %v1116 = vpop.permute.xlu0 %1115
        %1117 = vrot.lane.b32.xlu0 %v890, 48
        %v1118 = vpop.permute.xlu0 %1117
        %1119 = vrot.lane.b32.xlu0 %v933, 48
        %v1120 = vpop.permute.xlu0 %1119
        %1121 = vrot.lane.b32.xlu0 %v893, 48
        %v1122 = vpop.permute.xlu0 %1121
        %1123 = vrot.lane.b32.xlu0 %v934, 48
        %v1124 = vpop.permute.xlu0 %1123
        %1125 = vrot.lane.b32.xlu0 %v896, 48
        %v1126 = vpop.permute.xlu0 %1125
        %1127 = vrot.lane.b32.xlu0 %v935, 48
        %v1128 = vpop.permute.xlu0 %1127
        %1129 = vrot.lane.b32.xlu0 %v899, 48
        %v1130 = vpop.permute.xlu0 %1129
        %1131 = vrot.lane.b32.xlu0 %v936, 48
        %v1132 = vpop.permute.xlu0 %1131
        %1133 = vrot.lane.b32.xlu0 %v902, 48
        %v1134 = vpop.permute.xlu0 %1133
        %1135 = vrot.lane.b32.xlu0 %v937, 48
        %v1136 = vpop.permute.xlu0 %1135
        %1137 = vrot.lane.b32.xlu0 %v905, 48
        %v1138 = vpop.permute.xlu0 %1137
        %1139 = vrot.lane.b32.xlu0 %v938, 48
        %v1140 = vpop.permute.xlu0 %1139
        %1141 = vrot.lane.b32.xlu0 %v908, 48
        %v1142 = vpop.permute.xlu0 %1141
        %1159 = vrot.lane.b32.xlu0 %v833, 64
        %v1160 = vpop.permute.xlu0 %1159
        %1161 = vrot.lane.b32.xlu0 %v834, 64
        %v1162 = vpop.permute.xlu0 %1161
        %1163 = vrot.lane.b32.xlu0 %v835, 64
        %v1164 = vpop.permute.xlu0 %1163
        %1165 = vrot.lane.b32.xlu0 %v836, 64
        %v1166 = vpop.permute.xlu0 %1165
        %1167 = vrot.lane.b32.xlu0 %v837, 64
        %v1168 = vpop.permute.xlu0 %1167
        %1169 = vrot.lane.b32.xlu0 %v838, 64
        %v1170 = vpop.permute.xlu0 %1169
        %1171 = vrot.lane.b32.xlu0 %v839, 64
        %v1172 = vpop.permute.xlu0 %1171
        %1173 = vrot.lane.b32.xlu0 %v840, 64
        %v1174 = vpop.permute.xlu0 %1173
        %1175 = vrot.lane.b32.xlu0 %v841, 64
        %v1176 = vpop.permute.xlu0 %1175
        %1177 = vrot.lane.b32.xlu0 %v842, 64
        %v1178 = vpop.permute.xlu0 %1177
        %1179 = vrot.lane.b32.xlu0 %v843, 64
        %v1180 = vpop.permute.xlu0 %1179
        %1181 = vrot.lane.b32.xlu0 %v844, 64
        %v1182 = vpop.permute.xlu0 %1181
        %1183 = vrot.lane.b32.xlu0 %v845, 64
        %v1184 = vpop.permute.xlu0 %1183
        %1185 = vrot.lane.b32.xlu0 %v846, 64
        %v1186 = vpop.permute.xlu0 %1185
        %1187 = vrot.lane.b32.xlu0 %v847, 64
        %v1188 = vpop.permute.xlu0 %1187
        %1189 = vrot.lane.b32.xlu0 %v848, 64
        %v1190 = vpop.permute.xlu0 %1189
        %1208 = vrot.lane.b32.xlu0 %v946, 80
        %v1209 = vpop.permute.xlu0 %1208
        %1210 = vrot.lane.b32.xlu0 %v990, 80
        %v1211 = vpop.permute.xlu0 %1210
        %1212 = vrot.lane.b32.xlu0 %v949, 80
        %v1213 = vpop.permute.xlu0 %1212
        %1214 = vrot.lane.b32.xlu0 %v991, 80
        %v1215 = vpop.permute.xlu0 %1214
        %1216 = vrot.lane.b32.xlu0 %v952, 80
        %v1217 = vpop.permute.xlu0 %1216
        %1218 = vrot.lane.b32.xlu0 %v992, 80
        %v1219 = vpop.permute.xlu0 %1218
        %1220 = vrot.lane.b32.xlu0 %v955, 80
        %v1221 = vpop.permute.xlu0 %1220
        %1222 = vrot.lane.b32.xlu0 %v993, 80
        %v1223 = vpop.permute.xlu0 %1222
        %1224 = vrot.lane.b32.xlu0 %v958, 80
        %v1225 = vpop.permute.xlu0 %1224
        %1226 = vrot.lane.b32.xlu0 %v994, 80
        %v1227 = vpop.permute.xlu0 %1226
        %1228 = vrot.lane.b32.xlu0 %v961, 80
        %v1229 = vpop.permute.xlu0 %1228
        %1230 = vrot.lane.b32.xlu0 %v995, 80
        %v1231 = vpop.permute.xlu0 %1230
        %1232 = vrot.lane.b32.xlu0 %v964, 80
        %v1233 = vpop.permute.xlu0 %1232
        %1234 = vrot.lane.b32.xlu0 %v996, 80
        %v1235 = vpop.permute.xlu0 %1234
        %1236 = vrot.lane.b32.xlu0 %v967, 80
        %v1237 = vpop.permute.xlu0 %1236
        %1238 = vrot.lane.b32.xlu0 %v997, 80
        %v1239 = vpop.permute.xlu0 %1238
        %1257 = vrot.lane.b32.xlu0 %v932, 96
        %v1258 = vpop.permute.xlu0 %1257
        %1259 = vrot.lane.b32.xlu0 %v890, 96
        %v1260 = vpop.permute.xlu0 %1259
        %1261 = vrot.lane.b32.xlu0 %v933, 96
        %v1262 = vpop.permute.xlu0 %1261
        %1263 = vrot.lane.b32.xlu0 %v893, 96
        %v1264 = vpop.permute.xlu0 %1263
        %1265 = vrot.lane.b32.xlu0 %v934, 96
        %v1266 = vpop.permute.xlu0 %1265
        %1267 = vrot.lane.b32.xlu0 %v896, 96
        %v1268 = vpop.permute.xlu0 %1267
        %1269 = vrot.lane.b32.xlu0 %v935, 96
        %v1270 = vpop.permute.xlu0 %1269
        %1271 = vrot.lane.b32.xlu0 %v899, 96
        %v1272 = vpop.permute.xlu0 %1271
        %1273 = vrot.lane.b32.xlu0 %v936, 96
        %v1274 = vpop.permute.xlu0 %1273
        %1275 = vrot.lane.b32.xlu0 %v902, 96
        %v1276 = vpop.permute.xlu0 %1275
        %1277 = vrot.lane.b32.xlu0 %v937, 96
        %v1278 = vpop.permute.xlu0 %1277
        %1279 = vrot.lane.b32.xlu0 %v905, 96
        %v1280 = vpop.permute.xlu0 %1279
        %1281 = vrot.lane.b32.xlu0 %v938, 96
        %v1282 = vpop.permute.xlu0 %1281
        %1283 = vrot.lane.b32.xlu0 %v908, 96
        %v1284 = vpop.permute.xlu0 %1283
        %1285 = vrot.lane.b32.xlu0 %v939, 96
        %v1286 = vpop.permute.xlu0 %1285
        %1287 = vrot.lane.b32.xlu0 %v911, 96
        %v1288 = vpop.permute.xlu0 %1287
        %1305 = vrot.lane.b32.xlu0 %v835, 112
        %v1306 = vpop.permute.xlu0 %1305
        %1307 = vrot.lane.b32.xlu0 %v836, 112
        %v1308 = vpop.permute.xlu0 %1307
        %1309 = vrot.lane.b32.xlu0 %v837, 112
        %v1310 = vpop.permute.xlu0 %1309
        %1311 = vrot.lane.b32.xlu0 %v838, 112
        %v1312 = vpop.permute.xlu0 %1311
        %1313 = vrot.lane.b32.xlu0 %v839, 112
        %v1314 = vpop.permute.xlu0 %1313
        %1315 = vrot.lane.b32.xlu0 %v840, 112
        %v1316 = vpop.permute.xlu0 %1315
        %1317 = vrot.lane.b32.xlu0 %v841, 112
        %v1318 = vpop.permute.xlu0 %1317
        %1319 = vrot.lane.b32.xlu0 %v842, 112
        %v1320 = vpop.permute.xlu0 %1319
        %1321 = vrot.lane.b32.xlu0 %v843, 112
        %v1322 = vpop.permute.xlu0 %1321
        %1323 = vrot.lane.b32.xlu0 %v844, 112
        %v1324 = vpop.permute.xlu0 %1323
        %1325 = vrot.lane.b32.xlu0 %v845, 112
        %v1326 = vpop.permute.xlu0 %1325
        %1327 = vrot.lane.b32.xlu0 %v846, 112
        %v1328 = vpop.permute.xlu0 %1327
        %1329 = vrot.lane.b32.xlu0 %v847, 112
        %v1330 = vpop.permute.xlu0 %1329
        %1331 = vrot.lane.b32.xlu0 %v848, 112
        %v1332 = vpop.permute.xlu0 %1331
        %1333 = vrot.lane.b32.xlu0 %v859, 112
        %v1334 = vpop.permute.xlu0 %1333
        %1335 = vrot.lane.b32.xlu0 %v860, 112
        %v1336 = vpop.permute.xlu0 %1335
        %vm1353 = vcmask 130048
        %v1354 = vsel %vm1353, %v930, %v1000
        %v1355 = vsel %vm1353, %v884, %v1002
        %v1356 = vsel %vm1353, %v931, %v1004
        %v1357 = vsel %vm1353, %v887, %v1006
        %v1358 = vsel %vm1353, %v932, %v1008
        %v1359 = vsel %vm1353, %v890, %v1010
        %v1360 = vsel %vm1353, %v933, %v1012
        %v1361 = vsel %vm1353, %v893, %v1014
        %v1362 = vsel %vm1353, %v934, %v1016
        %v1363 = vsel %vm1353, %v896, %v1018
        %v1364 = vsel %vm1353, %v935, %v1020
        %v1365 = vsel %vm1353, %v899, %v1022
        %v1366 = vsel %vm1353, %v936, %v1024
        %v1367 = vsel %vm1353, %v902, %v1026
        %v1368 = vsel %vm1353, %v937, %v1028
        %v1369 = vsel %vm1353, %v905, %v1030
        %vm1370 = vcmask 261120
        %v1371 = vsel %vm1370, %v1354, %v1056
        %v1372 = vsel %vm1370, %v1355, %v1058
        %v1373 = vsel %vm1370, %v1356, %v1060
        %v1374 = vsel %vm1370, %v1357, %v1062
        %v1375 = vsel %vm1370, %v1358, %v1064
        %v1376 = vsel %vm1370, %v1359, %v1066
        %v1377 = vsel %vm1370, %v1360, %v1068
        %v1378 = vsel %vm1370, %v1361, %v1070
        %v1379 = vsel %vm1370, %v1362, %v1072
        %v1380 = vsel %vm1370, %v1363, %v1074
        %v1381 = vsel %vm1370, %v1364, %v1076
        %v1382 = vsel %vm1370, %v1365, %v1078
        %v1383 = vsel %vm1370, %v1366, %v1080
        %v1384 = vsel %vm1370, %v1367, %v1082
        %v1385 = vsel %vm1370, %v1368, %v1084
        %v1386 = vsel %vm1370, %v1369, %v1086
        %vm1387 = vcmask 392192
        %v1388 = vsel %vm1387, %v1371, %v1112
        %v1389 = vsel %vm1387, %v1372, %v1114
        %v1390 = vsel %vm1387, %v1373, %v1116
        %v1391 = vsel %vm1387, %v1374, %v1118
        %v1392 = vsel %vm1387, %v1375, %v1120
        %v1393 = vsel %vm1387, %v1376, %v1122
        %v1394 = vsel %vm1387, %v1377, %v1124
        %v1395 = vsel %vm1387, %v1378, %v1126
        %v1396 = vsel %vm1387, %v1379, %v1128
        %v1397 = vsel %vm1387, %v1380, %v1130
        %v1398 = vsel %vm1387, %v1381, %v1132
        %v1399 = vsel %vm1387, %v1382, %v1134
        %v1400 = vsel %vm1387, %v1383, %v1136
        %v1401 = vsel %vm1387, %v1384, %v1138
        %v1402 = vsel %vm1387, %v1385, %v1140
        %v1403 = vsel %vm1387, %v1386, %v1142
        %v1404 = vsel %vm633, %v1388, %v1160
        %v1405 = vsel %vm633, %v1389, %v1162
        %v1406 = vsel %vm633, %v1390, %v1164
        %v1407 = vsel %vm633, %v1391, %v1166
        %v1408 = vsel %vm633, %v1392, %v1168
        %v1409 = vsel %vm633, %v1393, %v1170
        %v1410 = vsel %vm633, %v1394, %v1172
        %v1411 = vsel %vm633, %v1395, %v1174
        %v1412 = vsel %vm633, %v1396, %v1176
        %v1413 = vsel %vm633, %v1397, %v1178
        %v1414 = vsel %vm633, %v1398, %v1180
        %v1415 = vsel %vm633, %v1399, %v1182
        %v1416 = vsel %vm633, %v1400, %v1184
        %v1417 = vsel %vm633, %v1401, %v1186
        %v1418 = vsel %vm633, %v1402, %v1188
        %v1419 = vsel %vm633, %v1403, %v1190
        %vm1420 = vcmask 654336
        %v1421 = vsel %vm1420, %v1404, %v1209
        %v1422 = vsel %vm1420, %v1405, %v1211
        %v1423 = vsel %vm1420, %v1406, %v1213
        %v1424 = vsel %vm1420, %v1407, %v1215
        %v1425 = vsel %vm1420, %v1408, %v1217
        %v1426 = vsel %vm1420, %v1409, %v1219
        %v1427 = vsel %vm1420, %v1410, %v1221
        %v1428 = vsel %vm1420, %v1411, %v1223
        %v1429 = vsel %vm1420, %v1412, %v1225
        %v1430 = vsel %vm1420, %v1413, %v1227
        %v1431 = vsel %vm1420, %v1414, %v1229
        %v1432 = vsel %vm1420, %v1415, %v1231
        %v1433 = vsel %vm1420, %v1416, %v1233
        %v1434 = vsel %vm1420, %v1417, %v1235
        %v1435 = vsel %vm1420, %v1418, %v1237
        %v1436 = vsel %vm1420, %v1419, %v1239
        %vm1437 = vcmask 785408
        %v1438 = vsel %vm1437, %v1421, %v1258
        %v1439 = vsel %vm1437, %v1422, %v1260
        %v1440 = vsel %vm1437, %v1423, %v1262
        %v1441 = vsel %vm1437, %v1424, %v1264
        %v1442 = vsel %vm1437, %v1425, %v1266
        %v1443 = vsel %vm1437, %v1426, %v1268
        %v1444 = vsel %vm1437, %v1427, %v1270
        %v1445 = vsel %vm1437, %v1428, %v1272
        %v1446 = vsel %vm1437, %v1429, %v1274
        %v1447 = vsel %vm1437, %v1430, %v1276
        %v1448 = vsel %vm1437, %v1431, %v1278
        %v1449 = vsel %vm1437, %v1432, %v1280
        %v1450 = vsel %vm1437, %v1433, %v1282
        %v1451 = vsel %vm1437, %v1434, %v1284
        %v1452 = vsel %vm1437, %v1435, %v1286
        %v1453 = vsel %vm1437, %v1436, %v1288
        %vm1454 = vcmask 916480
        %v1455 = vsel %vm1454, %v1438, %v1306
        %v1456 = vsel %vm1454, %v1439, %v1308
        %v1457 = vsel %vm1454, %v1440, %v1310
        %v1458 = vsel %vm1454, %v1441, %v1312
        %v1459 = vsel %vm1454, %v1442, %v1314
        %v1460 = vsel %vm1454, %v1443, %v1316
        %v1461 = vsel %vm1454, %v1444, %v1318
        %v1462 = vsel %vm1454, %v1445, %v1320
        %v1463 = vsel %vm1454, %v1446, %v1322
        %v1464 = vsel %vm1454, %v1447, %v1324
        %v1465 = vsel %vm1454, %v1448, %v1326
        %v1466 = vsel %vm1454, %v1449, %v1328
        %v1467 = vsel %vm1454, %v1450, %v1330
        %v1468 = vsel %vm1454, %v1451, %v1332
        %v1469 = vsel %vm1454, %v1452, %v1334
        %v1470 = vsel %vm1454, %v1453, %v1336
        %v1471 = vpack.c.bf16 %v1456, %v1455
        %v1472 = vpack.c.bf16 %v991, %v949
        %v1473 = vpack.c.bf16 %v1458, %v1457
        %v1474 = vpack.c.bf16 %v992, %v952
        %v1475 = vpack.c.bf16 %v1460, %v1459
        %v1476 = vpack.c.bf16 %v993, %v955
        %v1477 = vpack.c.bf16 %v1462, %v1461
        %v1478 = vpack.c.bf16 %v994, %v958
        %v1479 = vpack.c.bf16 %v1464, %v1463
        %v1480 = vpack.c.bf16 %v995, %v961
        %v1481 = vpack.c.bf16 %v1466, %v1465
        %v1482 = vpack.c.bf16 %v996, %v964
        %v1483 = vpack.c.bf16 %v1468, %v1467
        %v1484 = vpack.c.bf16 %v997, %v967
        %v1485 = vpack.c.bf16 %v1470, %v1469
        %v1486 = vpack.c.bf16 %v998, %v970
        %v1487 = vld [vmem:[%s6] sm:$0xf]
        %v1488 = vld [vmem:[%s6 + $0x4] sm:$0xf]
        %v1489 = vld [vmem:[%s6 + $0x8] sm:$0xf]
        %v1490 = vld [vmem:[%s6 + $0xc] sm:$0xf]
        %v1491 = vld [vmem:[%s6 + $0x10] sm:$0xf]
        %v1492 = vld [vmem:[%s6 + $0x14] sm:$0xf]
        %v1493 = vld [vmem:[%s6 + $0x18] sm:$0xf]
        %v1494 = vld [vmem:[%s6 + $0x1c] sm:$0xf]
        %v1495 = vld [vmem:[%s6 + $0x20] sm:$0xf]
        %v1496 = vld [vmem:[%s6 + $0x24] sm:$0xf]
        %v1497 = vld [vmem:[%s6 + $0x28] sm:$0xf]
        %v1498 = vld [vmem:[%s6 + $0x2c] sm:$0xf]
        %v1499 = vld [vmem:[%s6 + $0x30] sm:$0xf]
        %v1500 = vld [vmem:[%s6 + $0x34] sm:$0xf]
        %v1501 = vld [vmem:[%s6 + $0x38] sm:$0xf]
        %v1502 = vld [vmem:[%s6 + $0x3c] sm:$0xf]
        %v1503 = vld [vmem:[%s6 + $0x40] sm:$0xf]
        %v1504 = vld [vmem:[%s6 + $0x44] sm:$0xf]
        %v1523 = vunpack.c.l.b16 %v1487
        %v1524 = vunpack.c.l.b16 %v1488
        %v1525 = vunpack.c.l.b16 %v1489
        %v1526 = vunpack.c.l.b16 %v1490
        %v1527 = vunpack.c.l.b16 %v1491
        %v1528 = vunpack.c.l.b16 %v1492
        %v1529 = vunpack.c.l.b16 %v1493
        %v1530 = vunpack.c.l.b16 %v1494
        %v1531 = vunpack.c.l.b16 %v1495
        %v1532 = vunpack.c.l.b16 %v1496
        %v1533 = vunpack.c.l.b16 %v1497
        %v1534 = vunpack.c.l.b16 %v1498
        %v1535 = vunpack.c.l.b16 %v1499
        %v1536 = vunpack.c.l.b16 %v1500
        %v1537 = vunpack.c.l.b16 %v1501
        %v1538 = vunpack.c.l.b16 %v1502
        %v1539 = vunpack.c.l.b16 %v1503
        %v1540 = vunpack.c.l.b16 %v1504
        %v1541 = vpack.c.b16 %v1524, %v1523
        %v1542 = vpack.c.b16 %v1526, %v1525
        %v1543 = vpack.c.b16 %v1528, %v1527
        %v1544 = vpack.c.b16 %v1530, %v1529
        %v1545 = vpack.c.b16 %v1532, %v1531
        %v1546 = vpack.c.b16 %v1534, %v1533
        %v1547 = vpack.c.b16 %v1536, %v1535
        %v1548 = vpack.c.b16 %v1538, %v1537
        %v1549 = vpack.c.b16 %v1540, %v1539
        %v1560 = vsel %vm1353, %v1472, 0
        %v1563 = vsel %vm1353, %v1474, 0
        %v1566 = vsel %vm1353, %v1476, 0
        %v1569 = vsel %vm1353, %v1478, 0
        %v1572 = vsel %vm1353, %v1480, 0
        %v1575 = vsel %vm1353, %v1482, 0
        %v1578 = vsel %vm1353, %v1484, 0
        %v1581 = vsel %vm1353, %v1486, 0
        %1583 = vmatprep.subr.bf16.mxu0 0
        %1584 = vmatpush1.bf16.msra.mxu0 %v1548
        %1585 = vmatprep.subr.bf16.mxu0 0
        %1586 = vmatpush1.bf16.msra.mxu0 %v1547
        %1587 = vmatprep.subr.bf16.mxu0 0
        %1588 = vmatpush1.bf16.msra.mxu0 %v1546
        %1589 = vmatprep.subr.bf16.mxu0 0
        %1590 = vmatpush1.bf16.msra.mxu0 %v1545
        %1591 = vmatprep.subr.bf16.mxu0 0
        %1592 = vmatpush1.bf16.msra.mxu0 %v1544
        %1593 = vmatprep.subr.bf16.mxu0 0
        %1594 = vmatpush1.bf16.msra.mxu0 %v1543
        %1595 = vmatprep.subr.bf16.mxu0 0
        %1596 = vmatpush1.bf16.msra.mxu0 %v1542
        %1597 = vmatprep.subr.bf16.mxu0 0
        %1598 = vmatpush1.bf16.msra.mxu0 %v1541
        %1599 = vmatprep.subr.bf16.mxu0 0
        %1600 = vmatpush2.bf16.msra.mxu0 0
        %1601 = vmatprep.subr.bf16.mxu0 0
        %1602 = vmatpush2.bf16.msra.mxu0 0
        %1603 = vmatprep.subr.bf16.mxu0 0
        %1604 = vmatpush2.bf16.msra.mxu0 0
        %1605 = vmatprep.subr.bf16.mxu0 0
        %1606 = vmatpush2.bf16.msra.mxu0 0
        %1607 = vmatprep.subr.bf16.mxu0 0
        %1608 = vmatpush2.bf16.msra.mxu0 0
        %1609 = vmatprep.subr.bf16.mxu0 0
        %1610 = vmatpush2.bf16.msra.mxu0 0
        %1611 = vmatprep.subr.bf16.mxu0 0
        %1612 = vmatpush2.bf16.msra.mxu0 0
        %1613 = vmatprep.subr.bf16.mxu0 0
        %1614 = vmatpush2.bf16.msra.mxu0 %v1549
        %1615 = vmatprep.mubr.bf16.mxu0 %v1560
        %1616 = vmatmul.mubr.bf16.gmra.mxu0 %v1471
        %v1617 = vpop.f32.mrf.mxu0
        %v1618 = vadd.f32 0.0, %v1617
        %v1619 = vpop.f32.mrf.mxu0
        %v1620 = vpop.f32.mrf.mxu0
        %v1621 = vadd.f32 0.0, %v1620
        %v1622 = vpop.f32.mrf.mxu0
        %1623 = vmatprep.mubr.bf16.mxu0 %v1563
        %1624 = vmatmul.mubr.bf16.gmra.mxu0 %v1473
        %v1625 = vpop.f32.mrf.mxu0
        %v1626 = vadd.f32 0.0, %v1625
        %v1627 = vpop.f32.mrf.mxu0
        %v1628 = vpop.f32.mrf.mxu0
        %v1629 = vadd.f32 0.0, %v1628
        %v1630 = vpop.f32.mrf.mxu0
        %1631 = vmatprep.mubr.bf16.mxu0 %v1566
        %1632 = vmatmul.mubr.bf16.gmra.mxu0 %v1475
        %v1633 = vpop.f32.mrf.mxu0
        %v1634 = vadd.f32 0.0, %v1633
        %v1635 = vpop.f32.mrf.mxu0
        %v1636 = vpop.f32.mrf.mxu0
        %v1637 = vadd.f32 0.0, %v1636
        %v1638 = vpop.f32.mrf.mxu0
        %1639 = vmatprep.mubr.bf16.mxu0 %v1569
        %1640 = vmatmul.mubr.bf16.gmra.mxu0 %v1477
        %v1641 = vpop.f32.mrf.mxu0
        %v1642 = vadd.f32 0.0, %v1641
        %v1643 = vpop.f32.mrf.mxu0
        %v1644 = vpop.f32.mrf.mxu0
        %v1645 = vadd.f32 0.0, %v1644
        %v1646 = vpop.f32.mrf.mxu0
        %1647 = vmatprep.mubr.bf16.mxu0 %v1572
        %1648 = vmatmul.mubr.bf16.gmra.mxu0 %v1479
        %v1649 = vpop.f32.mrf.mxu0
        %v1650 = vadd.f32 0.0, %v1649
        %v1651 = vpop.f32.mrf.mxu0
        %v1652 = vpop.f32.mrf.mxu0
        %v1653 = vadd.f32 0.0, %v1652
        %v1654 = vpop.f32.mrf.mxu0
        %1655 = vmatprep.mubr.bf16.mxu0 %v1575
        %1656 = vmatmul.mubr.bf16.gmra.mxu0 %v1481
        %v1657 = vpop.f32.mrf.mxu0
        %v1658 = vadd.f32 0.0, %v1657
        %v1659 = vpop.f32.mrf.mxu0
        %v1660 = vpop.f32.mrf.mxu0
        %v1661 = vadd.f32 0.0, %v1660
        %v1662 = vpop.f32.mrf.mxu0
        %1663 = vmatprep.mubr.bf16.mxu0 %v1578
        %1664 = vmatmul.mubr.bf16.gmra.mxu0 %v1483
        %v1665 = vpop.f32.mrf.mxu0
        %v1666 = vadd.f32 0.0, %v1665
        %v1667 = vpop.f32.mrf.mxu0
        %v1668 = vpop.f32.mrf.mxu0
        %v1669 = vadd.f32 0.0, %v1668
        %v1670 = vpop.f32.mrf.mxu0
        %1671 = vmatprep.mubr.bf16.mxu0 %v1581
        %1672 = vmatmul.mubr.bf16.gmra.mxu0 %v1485
        %v1673 = vpop.f32.mrf.mxu0
        %v1674 = vadd.f32 0.0, %v1673
        %v1675 = vpop.f32.mrf.mxu0
        %v1676 = vpop.f32.mrf.mxu0
        %v1677 = vadd.f32 0.0, %v1676
        %v1678 = vpop.f32.mrf.mxu0
        %1679 = vdwg.mxu0
        %v1680 = vld [vmem:[%s7] sm:$0x1]
        %v1682 = vlaneseq
        %v1683 = vshrl.u32 %v1682, 7
        %v1684 = vsub.s32 0, %v1683
        %v1685 = vrot.slane %v1680, %v1684
        %v1687 = vmul.f32 %v1618, %v1685
        %v1688 = vmul.f32 %v1621, %v1685
        %v1689 = vmul.f32 %v1626, %v1685
        %v1690 = vmul.f32 %v1629, %v1685
        %v1691 = vmul.f32 %v1634, %v1685
        %v1692 = vmul.f32 %v1637, %v1685
        %v1693 = vmul.f32 %v1642, %v1685
        %v1694 = vmul.f32 %v1645, %v1685
        %v1695 = vmul.f32 %v1650, %v1685
        %v1696 = vmul.f32 %v1653, %v1685
        %v1697 = vmul.f32 %v1658, %v1685
        %v1698 = vmul.f32 %v1661, %v1685
        %v1699 = vmul.f32 %v1666, %v1685
        %v1700 = vmul.f32 %v1669, %v1685
        %v1701 = vmul.f32 %v1674, %v1685
        %v1702 = vmul.f32 %v1677, %v1685
        %v1703 = vld [vmem:[%s8] sm:$0x1]
        %v1705 = vlaneseq
        %v1706 = vshrl.u32 %v1705, 7
        %v1707 = vsub.s32 0, %v1706
        %v1708 = vrot.slane %v1703, %v1707
        %v1710 = vadd.f32 %v1687, %v1708
        %v1711 = vadd.f32 %v1688, %v1708
        %v1712 = vadd.f32 %v1689, %v1708
        %v1713 = vadd.f32 %v1690, %v1708
        %v1714 = vadd.f32 %v1691, %v1708
        %v1715 = vadd.f32 %v1692, %v1708
        %v1716 = vadd.f32 %v1693, %v1708
        %v1717 = vadd.f32 %v1694, %v1708
        %v1718 = vadd.f32 %v1695, %v1708
        %v1719 = vadd.f32 %v1696, %v1708
        %v1720 = vadd.f32 %v1697, %v1708
        %v1721 = vadd.f32 %v1698, %v1708
        %v1722 = vadd.f32 %v1699, %v1708
        %v1723 = vadd.f32 %v1700, %v1708
        %v1724 = vadd.f32 %v1701, %v1708
        %v1725 = vadd.f32 %v1702, %v1708
        %v1726 = vmax.f32 %v1710, 0.0
        %v1727 = vmax.f32 %v1711, 0.0
        %v1728 = vmax.f32 %v1712, 0.0
        %v1729 = vmax.f32 %v1713, 0.0
        %v1730 = vmax.f32 %v1714, 0.0
        %v1731 = vmax.f32 %v1715, 0.0
        %v1732 = vmax.f32 %v1716, 0.0
        %v1733 = vmax.f32 %v1717, 0.0
        %v1734 = vmax.f32 %v1718, 0.0
        %v1735 = vmax.f32 %v1719, 0.0
        %v1736 = vmax.f32 %v1720, 0.0
        %v1737 = vmax.f32 %v1721, 0.0
        %v1738 = vmax.f32 %v1722, 0.0
        %v1739 = vmax.f32 %v1723, 0.0
        %v1740 = vmax.f32 %v1724, 0.0
        %v1741 = vmax.f32 %v1725, 0.0
        %v1742 = vpack.c.bf16 %v1727, %v1726
        %v1743 = vpack.c.bf16 %v1729, %v1728
        %v1744 = vpack.c.bf16 %v1731, %v1730
        %v1745 = vpack.c.bf16 %v1733, %v1732
        %v1746 = vpack.c.bf16 %v1735, %v1734
        %v1747 = vpack.c.bf16 %v1737, %v1736
        %v1748 = vpack.c.bf16 %v1739, %v1738
        %v1749 = vpack.c.bf16 %v1741, %v1740
        %v1750 = vld [vmem:[%s9] sm:$0xf]
        %v1751 = vld [vmem:[%s9 + $0x4] sm:$0xf]
        %v1754 = vunpack.c.l.b16 %v1750
        %v1755 = vunpack.c.l.b16 %v1751
        %v1756 = vpack.c.b16 %v1755, %v1754
        %v1759 = vsel %vm1353, %v1742, 0
        %v1762 = vsel %vm1353, %v1743, 0
        %v1765 = vsel %vm1353, %v1744, 0
        %v1768 = vsel %vm1353, %v1745, 0
        %v1771 = vsel %vm1353, %v1746, 0
        %v1774 = vsel %vm1353, %v1747, 0
        %v1777 = vsel %vm1353, %v1748, 0
        %v1780 = vsel %vm1353, %v1749, 0
        %1782 = vmatprep.subr.bf16.mxu0 0
        %1783 = vmatpush1.bf16.msra.mxu0 0
        %1784 = vmatprep.subr.bf16.mxu0 0
        %1785 = vmatpush1.bf16.msra.mxu0 0
        %1786 = vmatprep.subr.bf16.mxu0 0
        %1787 = vmatpush1.bf16.msra.mxu0 0
        %1788 = vmatprep.subr.bf16.mxu0 0
        %1789 = vmatpush1.bf16.msra.mxu0 0
        %1790 = vmatprep.subr.bf16.mxu0 0
        %1791 = vmatpush1.bf16.msra.mxu0 0
        %1792 = vmatprep.subr.bf16.mxu0 0
        %1793 = vmatpush1.bf16.msra.mxu0 0
        %1794 = vmatprep.subr.bf16.mxu0 0
        %1795 = vmatpush1.bf16.msra.mxu0 0
        %1796 = vmatprep.subr.bf16.mxu0 0
        %1797 = vmatpush1.bf16.msra.mxu0 %v1756
        %1798 = vmatprep.subr.bf16.mxu0 0
        %1799 = vmatpush2.bf16.msra.mxu0 0
        %1800 = vmatprep.subr.bf16.mxu0 0
        %1801 = vmatpush2.bf16.msra.mxu0 0
        %1802 = vmatprep.subr.bf16.mxu0 0
        %1803 = vmatpush2.bf16.msra.mxu0 0
        %1804 = vmatprep.subr.bf16.mxu0 0
        %1805 = vmatpush2.bf16.msra.mxu0 0
        %1806 = vmatprep.subr.bf16.mxu0 0
        %1807 = vmatpush2.bf16.msra.mxu0 0
        %1808 = vmatprep.subr.bf16.mxu0 0
        %1809 = vmatpush2.bf16.msra.mxu0 0
        %1810 = vmatprep.subr.bf16.mxu0 0
        %1811 = vmatpush2.bf16.msra.mxu0 0
        %1812 = vmatprep.subr.bf16.mxu0 0
        %1813 = vmatpush2.bf16.msra.mxu0 0
        %1814 = vmatprep.mubr.bf16.mxu0 0
        %1815 = vmatmul.mubr.bf16.gmra.mxu0 %v1759
        %v1816 = vpop.f32.mrf.mxu0
        %v1817 = vadd.f32 0.0, %v1816
        %v1818 = vpop.f32.mrf.mxu0
        %v1819 = vpop.f32.mrf.mxu0
        %v1820 = vadd.f32 0.0, %v1819
        %v1821 = vpop.f32.mrf.mxu0
        %1822 = vmatprep.mubr.bf16.mxu0 0
        %1823 = vmatmul.mubr.bf16.gmra.mxu0 %v1762
        %v1824 = vpop.f32.mrf.mxu0
        %v1825 = vadd.f32 0.0, %v1824
        %v1826 = vpop.f32.mrf.mxu0
        %v1827 = vpop.f32.mrf.mxu0
        %v1828 = vadd.f32 0.0, %v1827
        %v1829 = vpop.f32.mrf.mxu0
        %1830 = vmatprep.mubr.bf16.mxu0 0
        %1831 = vmatmul.mubr.bf16.gmra.mxu0 %v1765
        %v1832 = vpop.f32.mrf.mxu0
        %v1833 = vadd.f32 0.0, %v1832
        %v1834 = vpop.f32.mrf.mxu0
        %v1835 = vpop.f32.mrf.mxu0
        %v1836 = vadd.f32 0.0, %v1835
        %v1837 = vpop.f32.mrf.mxu0
        %1838 = vmatprep.mubr.bf16.mxu0 0
        %1839 = vmatmul.mubr.bf16.gmra.mxu0 %v1768
        %v1840 = vpop.f32.mrf.mxu0
        %v1841 = vadd.f32 0.0, %v1840
        %v1842 = vpop.f32.mrf.mxu0
        %v1843 = vpop.f32.mrf.mxu0
        %v1844 = vadd.f32 0.0, %v1843
        %v1845 = vpop.f32.mrf.mxu0
        %1846 = vmatprep.mubr.bf16.mxu0 0
        %1847 = vmatmul.mubr.bf16.gmra.mxu0 %v1771
        %v1848 = vpop.f32.mrf.mxu0
        %v1849 = vadd.f32 0.0, %v1848
        %v1850 = vpop.f32.mrf.mxu0
        %v1851 = vpop.f32.mrf.mxu0
        %v1852 = vadd.f32 0.0, %v1851
        %v1853 = vpop.f32.mrf.mxu0
        %1854 = vmatprep.mubr.bf16.mxu0 0
        %1855 = vmatmul.mubr.bf16.gmra.mxu0 %v1774
        %v1856 = vpop.f32.mrf.mxu0
        %v1857 = vadd.f32 0.0, %v1856
        %v1858 = vpop.f32.mrf.mxu0
        %v1859 = vpop.f32.mrf.mxu0
        %v1860 = vadd.f32 0.0, %v1859
        %v1861 = vpop.f32.mrf.mxu0
        %1862 = vmatprep.mubr.bf16.mxu0 0
        %1863 = vmatmul.mubr.bf16.gmra.mxu0 %v1777
        %v1864 = vpop.f32.mrf.mxu0
        %v1865 = vadd.f32 0.0, %v1864
        %v1866 = vpop.f32.mrf.mxu0
        %v1867 = vpop.f32.mrf.mxu0
        %v1868 = vadd.f32 0.0, %v1867
        %v1869 = vpop.f32.mrf.mxu0
        %1870 = vmatprep.mubr.bf16.mxu0 0
        %1871 = vmatmul.mubr.bf16.gmra.mxu0 %v1780
        %v1872 = vpop.f32.mrf.mxu0
        %v1873 = vadd.f32 0.0, %v1872
        %v1874 = vpop.f32.mrf.mxu0
        %v1875 = vpop.f32.mrf.mxu0
        %v1876 = vadd.f32 0.0, %v1875
        %v1877 = vpop.f32.mrf.mxu0
        %1878 = vdwg.mxu0
        %v1879 = vld [vmem:[%s10] sm:$0x1]
        %v1881 = vlaneseq
        %v1882 = vshrl.u32 %v1881, 7
        %v1883 = vsub.s32 0, %v1882
        %v1884 = vrot.slane %v1879, %v1883
        %v1886 = vmul.f32 %v1817, %v1884
        %v1887 = vmul.f32 %v1820, %v1884
        %v1888 = vmul.f32 %v1825, %v1884
        %v1889 = vmul.f32 %v1828, %v1884
        %v1890 = vmul.f32 %v1833, %v1884
        %v1891 = vmul.f32 %v1836, %v1884
        %v1892 = vmul.f32 %v1841, %v1884
        %v1893 = vmul.f32 %v1844, %v1884
        %v1894 = vmul.f32 %v1849, %v1884
        %v1895 = vmul.f32 %v1852, %v1884
        %v1896 = vmul.f32 %v1857, %v1884
        %v1897 = vmul.f32 %v1860, %v1884
        %v1898 = vmul.f32 %v1865, %v1884
        %v1899 = vmul.f32 %v1868, %v1884
        %v1900 = vmul.f32 %v1873, %v1884
        %v1901 = vmul.f32 %v1876, %v1884
        %v1902 = vld [vmem:[%s11] sm:$0x1]
        %v1904 = vlaneseq
        %v1905 = vshrl.u32 %v1904, 7
        %v1906 = vsub.s32 0, %v1905
        %v1907 = vrot.slane %v1902, %v1906
        %v1909 = vadd.f32 %v1886, %v1907
        %v1910 = vadd.f32 %v1887, %v1907
        %v1911 = vadd.f32 %v1888, %v1907
        %v1912 = vadd.f32 %v1889, %v1907
        %v1913 = vadd.f32 %v1890, %v1907
        %v1914 = vadd.f32 %v1891, %v1907
        %v1915 = vadd.f32 %v1892, %v1907
        %v1916 = vadd.f32 %v1893, %v1907
        %v1917 = vadd.f32 %v1894, %v1907
        %v1918 = vadd.f32 %v1895, %v1907
        %v1919 = vadd.f32 %v1896, %v1907
        %v1920 = vadd.f32 %v1897, %v1907
        %v1921 = vadd.f32 %v1898, %v1907
        %v1922 = vadd.f32 %v1899, %v1907
        %v1923 = vadd.f32 %v1900, %v1907
        %v1924 = vadd.f32 %v1901, %v1907
        %v1925 = vadd.f32 %v1909, %v571
        %v1926 = vadd.f32 %v1910, %v572
        %v1927 = vadd.f32 %v1911, %v573
        %v1928 = vadd.f32 %v1912, %v574
        %v1929 = vadd.f32 %v1913, %v575
        %v1930 = vadd.f32 %v1914, %v576
        %v1931 = vadd.f32 %v1915, %v577
        %v1932 = vadd.f32 %v1916, %v578
        %v1933 = vadd.f32 %v1917, %v579
        %v1934 = vadd.f32 %v1918, %v580
        %v1935 = vadd.f32 %v1919, %v581
        %v1936 = vadd.f32 %v1920, %v582
        %v1937 = vadd.f32 %v1921, %v583
        %v1938 = vadd.f32 %v1922, %v584
        %v1939 = vadd.f32 %v1923, %v585
        %v1940 = vadd.f32 %v1924, %v586
        %v1941 = vmax.f32 %v1925, 0.0
        %v1942 = vmax.f32 %v1926, 0.0
        %v1943 = vmax.f32 %v1927, 0.0
        %v1944 = vmax.f32 %v1928, 0.0
        %v1945 = vmax.f32 %v1929, 0.0
        %v1946 = vmax.f32 %v1930, 0.0
        %v1947 = vmax.f32 %v1931, 0.0
        %v1948 = vmax.f32 %v1932, 0.0
        %v1949 = vmax.f32 %v1933, 0.0
        %v1950 = vmax.f32 %v1934, 0.0
        %v1951 = vmax.f32 %v1935, 0.0
        %v1952 = vmax.f32 %v1936, 0.0
        %v1953 = vmax.f32 %v1937, 0.0
        %v1954 = vmax.f32 %v1938, 0.0
        %v1955 = vmax.f32 %v1939, 0.0
        %v1956 = vmax.f32 %v1940, 0.0
        %1957 = vst.msk [vmem:[%s559] sm:$0xff] %vm633, %v1941
        %1958 = vst.msk [vmem:[%s559 + $0x8] sm:$0xff] %vm633, %v1942
        %1959 = vst.msk [vmem:[%s559 + $0x10] sm:$0xff] %vm633, %v1943
        %1960 = vst.msk [vmem:[%s559 + $0x18] sm:$0xff] %vm633, %v1944
        %1961 = vst.msk [vmem:[%s559 + $0x20] sm:$0xff] %vm633, %v1945
        %1962 = vst.msk [vmem:[%s559 + $0x28] sm:$0xff] %vm633, %v1946
        %1963 = vst.msk [vmem:[%s559 + $0x30] sm:$0xff] %vm633, %v1947
        %1964 = vst.msk [vmem:[%s559 + $0x38] sm:$0xff] %vm633, %v1948
        %1965 = vst.msk [vmem:[%s559 + $0x40] sm:$0xff] %vm633, %v1949
        %1966 = vst.msk [vmem:[%s559 + $0x48] sm:$0xff] %vm633, %v1950
        %1967 = vst.msk [vmem:[%s559 + $0x50] sm:$0xff] %vm633, %v1951
        %1968 = vst.msk [vmem:[%s559 + $0x58] sm:$0xff] %vm633, %v1952
        %1969 = vst.msk [vmem:[%s559 + $0x60] sm:$0xff] %vm633, %v1953
        %1970 = vst.msk [vmem:[%s559 + $0x68] sm:$0xff] %vm633, %v1954
        %1971 = vst.msk [vmem:[%s559 + $0x70] sm:$0xff] %vm633, %v1955
        %1972 = vst.msk [vmem:[%s559 + $0x78] sm:$0xff] %vm633, %v1956
        %s1973 = sand.u32 %s343, 1
        %s1974 = scalar_lea.sflag [#allocation4], %s1973
        %s1975 = sand.u32 %s343, 1
        %s1976 = smul.addr %s1975, 128
        %s1977 = scalar_lea.vmem [#allocation8], %s1976
        // Predicated region
        $region81: #{tpu_custom_call.1} parent=67 // pred_check
          %p1978 = pneg %p353
        $region82: #{tpu_custom_call.1} parent=67 // pred_check_branch
          %1980 = sbr.rel (%p1978) target = $region84
        $region83: #{tpu_custom_call.1} parent=67 // pred_region
          %s1981 = smul.u32 8, %s37
          %s1983 = ssub.s32 2048, 2048
          %1984 = vsyncadd %s1974, %s1983
          %s1985 = smul.addr %s1981, 2
          %s1986 = smul.addr %s36, 32
          %s1987 = sadd.s32 %s1985, %s1986
          %s1988 = smul.addr %s1987, 128
          %s1989 = scalar_lea.hbm %s12, %s1988
          %s1990 = sshll.u32 %s1977, 4
          %s1991 = int_to_ptr.vmem [resolvable:$true] %s1990
          %1996 = dma.vmem_to_hbm [thread:$0]  %s1991, 2048, %s1989, %s1974, 128, 128, 8
        $region84: #{tpu_custom_call.1} parent=67 // pred_fallthru
          _
      $region68: #{tpu_custom_call.1} parent=5 // pred_fallthru
        _
      %p1997 = scmp.le.s32.totalorder 2, %s27
      // Predicated region
      $region85: #{tpu_custom_call.1} parent=5 // pred_check
        %p1998 = pneg %p1997
      $region86: #{tpu_custom_call.1} parent=5 // pred_check_branch
        %2000 = sbr.rel (%p1998) target = $region88
      $region87: #{tpu_custom_call.1} parent=5 // pred_region
        %s2001 = ssub.s32 %s27, 2
        // Predicated region
        $region89: #{tpu_custom_call.1} parent=87 // pred_check
          %p2002 = pneg %p359
        $region90: #{tpu_custom_call.1} parent=87 // pred_check_branch
          %2004 = sbr.rel (%p2002) target = $region92
        $region91: #{tpu_custom_call.1} parent=87 // pred_region
          %s2005 = sand.u32 %s344, 1
          %s2006 = scalar_lea.sflag [#allocation4], %s2005
          %s2007 = sand.u32 %s344, 1
          %s2008 = smul.addr %s2007, 128
          %s2009 = scalar_lea.vmem [#allocation8], %s2008
          %2010 = dma.done %s2006, 2048
        $region92: #{tpu_custom_call.1} parent=87 // pred_fallthru
          _
      $region88: #{tpu_custom_call.1} parent=5 // pred_fallthru
        _
    $region6: #{tpu_custom_call.1} parent=1 // loop_footer
      %s31 = sadd.s32 1, %s27
    $region7: #{tpu_custom_call.1} parent=1 // loop_footer_branch
      %26 = sbr.rel target = $region3
    $region8: #{tpu_custom_call.1} parent=1 // loop_exit
      _
    %2011 = vsyncpa [#allocation3], 1
    %s2012 = scalar_lea.sflag [#allocation3], 1
    %2013 = vsyncpa %s2012, 1
    %2014 = vsyncpa [#allocation6], 1
    %s2015 = scalar_lea.sflag [#allocation6], 1
    %2016 = vsyncpa %s2015, 1
    %2017 = vsyncpa [#allocation4], 1
    %s2018 = scalar_lea.sflag [#allocation4], 1
    %2019 = vsyncpa %s2018, 1

</llo_original>
